<compile_context>
chip_gen: v6e
topology: v6e:2x2x1
jax: 0.10.0
libtpu: 0.0.40
codegen_flags: <defaults>
</compile_context>

<pallas_src>
import jax
import jax.numpy as jnp
from jax.experimental import pallas as pl
from jax.experimental.pallas import tpu as pltpu


# ---------------------------------------------------------------------------
# Kernel
# ---------------------------------------------------------------------------
def _lsn_ff_kernel(
    x1_ref, x2_ref,
    w1_ref, w2_ref, w3a_ref, w3b_ref, w4_ref, w56_ref, wout_ref,
    b_ref,
    out_ref,
):
    tm = x1_ref.shape[0]
    H = w2_ref.shape[0]
    O2 = wout_ref.shape[1]          # 2 * output_size
    cdt = w1_ref.dtype              # compute dtype (bf16 or f32)

    # Packed bias rows (kept in f32; added to the f32 MXU accumulators).
    b1 = b_ref[0:1, :H]
    b2 = b_ref[1:2, :H]
    b3 = b_ref[2:3, :H]
    b4 = b_ref[3:4, :H]
    b56 = b_ref[4:5, :2 * H]
    bout = b_ref[5:6, :O2]

    def lin(x, w_ref, b):
        return jnp.dot(x.astype(cdt), w_ref[...],
                       preferred_element_type=jnp.float32) + b

    # Shared trunk fc2(fc1(.)) applied ONCE to [x1; x2] stacked along sublanes.
    x12 = jnp.concatenate([x1_ref[...], x2_ref[...]], axis=0)    # (2*tm, D_in)
    h = lin(lin(x12, w1_ref, b1), w2_ref, b2)                    # (2*tm, H) f32
    h1 = h[:tm]
    h2 = h[tm:]

    # fc3(cat([h1, h2], dim=-1)) == h1 @ W3[:H] + h2 @ W3[H:] + b3
    x = (jnp.dot(h1.astype(cdt), w3a_ref[...], preferred_element_type=jnp.float32)
         + jnp.dot(h2.astype(cdt), w3b_ref[...], preferred_element_type=jnp.float32)
         + b3)

    x = lin(x, w4_ref, b4)        # fc4
    x = lin(x, w56_ref, b56)      # [fc5(x) | fc6(x)]            -> (tm, 2H)
    y = lin(x, wout_ref, bout)    # [fcOut1(fc5) | fcOut2(fc6)]  -> (tm, 2O)

    out_ref[...] = y.astype(out_ref.dtype)


# ---------------------------------------------------------------------------
# Parameter packing (done once, not per forward call)
# ---------------------------------------------------------------------------
def pack_params(params, compute_dtype=jnp.bfloat16):
    """Pre-split w3, fuse fc5/fc6 + fcOut1/fcOut2, pack biases, cast weights."""
    H = params["w1"].shape[1]
    O = params["wo1"].shape[1]
    cdt = compute_dtype

    w3 = params["w3"]
    w56 = jnp.concatenate([params["w5"], params["w6"]], axis=1)        # (H, 2H)
    wout = jnp.zeros((2 * H, 2 * O), jnp.float32)
    wout = wout.at[:H, :O].set(params["wo1"]).at[H:, O:].set(params["wo2"])

    bias_rows = [
        params["b1"], params["b2"], params["b3"], params["b4"],
        jnp.concatenate([params["b5"], params["b6"]]),                 # (2H,)
        jnp.concatenate([params["bo1"], params["bo2"]]),               # (2O,)
    ]
    wb = max(2 * H, 2 * O)
    bmat = jnp.zeros((len(bias_rows), wb), jnp.float32)
    for r, b in enumerate(bias_rows):
        bmat = bmat.at[r, : b.shape[0]].set(b.astype(jnp.float32))

    return {
        "w1": params["w1"].astype(cdt),
        "w2": params["w2"].astype(cdt),
        "w3a": w3[:H, :].astype(cdt),
        "w3b": w3[H:, :].astype(cdt),
        "w4": params["w4"].astype(cdt),
        "w56": w56.astype(cdt),
        "wout": wout.astype(cdt),
        "biases": bmat,
    }


# ---------------------------------------------------------------------------
# Tile sizing against a conservative VMEM budget (fits v5e/v6e/v7x defaults)
# ---------------------------------------------------------------------------
def _choose_tile_m(m, d_in, hidden, o2, act_bytes, requested,
                   vmem_budget=24 << 20):
    weight_elems = (d_in * hidden + 4 * hidden * hidden
                    + hidden * 2 * hidden + 2 * hidden * o2)
    budget = vmem_budget - 2 * weight_elems * act_bytes - 6 * 2 * hidden * 4
    # Per-row cost: double-buffered x1/x2 tiles + double-buffered f32 output
    # tile + live f32 intermediates (x12, h, x, x56, y) with 2x slack.
    per_row = (2 * 2 * d_in * act_bytes
               + 2 * o2 * 4
               + 2 * 4 * (2 * d_in + 3 * hidden + 2 * hidden + o2))
    cap = max(16, budget // max(per_row, 1))
    tm = max(16, (min(requested, cap) // 16) * 16)   # multiple of 16 sublanes
    m_ceil = -(-m // 16) * 16                        # padded problem size
    return min(tm, m_ceil)


# ---------------------------------------------------------------------------
# pallas_call builder + wrapper
# ---------------------------------------------------------------------------
def _build_and_run(x1f, x2f, weights, biases, tm, m_pad, d_in, o2, grid, cost,
                   single_buffer_weights):
    w_kwargs = {}
    if single_buffer_weights:
        # Constant-index operands: no point double-buffering them.
        w_kwargs = dict(pipeline_mode=pl.Buffered(1))

    w_specs = [pl.BlockSpec(w.shape, lambda i: (0, 0), **w_kwargs)
               for w in weights]
    b_spec = pl.BlockSpec(biases.shape, lambda i: (0, 0), **w_kwargs)
    in_specs = ([pl.BlockSpec((tm, d_in), lambda i: (i, 0)),
                 pl.BlockSpec((tm, d_in), lambda i: (i, 0))]
                + w_specs + [b_spec])

    return pl.pallas_call(
        _lsn_ff_kernel,
        out_shape=jax.ShapeDtypeStruct((m_pad, o2), jnp.float32),
        grid_spec=pltpu.PrefetchScalarGridSpec(
            num_scalar_prefetch=0,
            grid=grid,
            in_specs=in_specs,
            out_specs=pl.BlockSpec((tm, o2), lambda i: (i, 0)),
        ),
        compiler_params=pltpu.CompilerParams(
            dimension_semantics=("parallel",),
        ),
        cost_estimate=cost,
    )(x1f, x2f, *weights, biases)


def lsn_ff_linear_forward(x1, x2, packed, *, tile_m=512):
    """x1, x2: (B, S, input_size). Returns (B, S, 2 * output_size) float32."""
    B, S, d_in = x1.shape
    m = B * S
    H = packed["w2"].shape[0]
    o2 = packed["wout"].shape[1]
    cdt = packed["w1"].dtype
    act_bytes = jnp.dtype(cdt).itemsize

    tm = _choose_tile_m(m, d_in, H, o2, act_bytes, tile_m)
    m_pad = -(-m // tm) * tm
    grid = (m_pad // tm,)

    x1f = x1.reshape(m, d_in).astype(cdt)
    x2f = x2.reshape(m, d_in).astype(cdt)
    if m_pad != m:
        pad = ((0, m_pad - m), (0, 0))
        x1f = jnp.pad(x1f, pad)
        x2f = jnp.pad(x2f, pad)

    weights = [packed[k] for k in ("w1", "w2", "w3a", "w3b", "w4", "w56", "wout")]
    biases = packed["biases"]

    weight_bytes = sum(int(w.size) * act_bytes for w in weights)
    cost = pl.CostEstimate(
        flops=int(2 * m * (2 * d_in * H + 7 * H * H + 2 * H * o2)),
        transcendentals=0,
        bytes_accessed=int(2 * m_pad * d_in * act_bytes + weight_bytes
                           + int(biases.size) * 4 + m_pad * o2 * 4),
    )

    try:
        out_flat = _build_and_run(x1f, x2f, weights, biases, tm, m_pad, d_in,
                                  o2, grid, cost, single_buffer_weights=True)
    except Exception:
        # pl.Buffered(1) unsupported on this jax/Mosaic build -> default mode.
        out_flat = _build_and_run(x1f, x2f, weights, biases, tm, m_pad, d_in,
                                  o2, grid, cost, single_buffer_weights=False)

    return out_flat[:m].reshape(B, S, o2)


# ---------------------------------------------------------------------------
# Deterministic init (PyTorch nn.Linear style: U(-1/sqrt(in), 1/sqrt(in)))
# ---------------------------------------------------------------------------
def init_params(key, input_size, hidden_size, output_size):
    def linear(key, fan_in, fan_out):
        kw, kb = jax.random.split(key)
        bound = 1.0 / jnp.sqrt(fan_in)
        w = jax.random.uniform(kw, (fan_in, fan_out), jnp.float32,
                               minval=-bound, maxval=bound)
        b = jax.random.uniform(kb, (fan_out,), jnp.float32,
                               minval=-bound, maxval=bound)
        return w, b

    keys = jax.random.split(key, 8)
    p = {}
    p["w1"], p["b1"] = linear(keys[0], input_size, hidden_size)
    p["w2"], p["b2"] = linear(keys[1], hidden_size, hidden_size)
    p["w3"], p["b3"] = linear(keys[2], 2 * hidden_size, hidden_size)
    p["w4"], p["b4"] = linear(keys[3], hidden_size, hidden_size)
    p["w5"], p["b5"] = linear(keys[4], hidden_size, hidden_size)
    p["w6"], p["b6"] = linear(keys[5], hidden_size, hidden_size)
    p["wo1"], p["bo1"] = linear(keys[6], hidden_size, output_size)
    p["wo2"], p["bo2"] = linear(keys[7], hidden_size, output_size)
    return p


# Pure-JAX reference (mirrors the PyTorch forward exactly).
def reference_forward(x1, x2, p):
    lin = lambda x, w, b: x @ w + b
    h1 = lin(lin(x1, p["w1"], p["b1"]), p["w2"], p["b2"])
    h2 = lin(lin(x2, p["w1"], p["b1"]), p["w2"], p["b2"])
    x = lin(jnp.concatenate([h1, h2], axis=2), p["w3"], p["b3"])
    x = lin(x, p["w4"], p["b4"])
    x3 = lin(lin(x, p["w5"], p["b5"]), p["wo1"], p["bo1"])
    x4 = lin(lin(x, p["w6"], p["b6"]), p["wo2"], p["bo2"])
    return jnp.concatenate([x3, x4], axis=2)


if __name__ == "__main__":
    B, S = 2, 8
    input_size, hidden_size, output_size = 16, 32, 1

    key = jax.random.PRNGKey(0)
    k_params, k_x1, k_x2 = jax.random.split(key, 3)

    params = init_params(k_params, input_size, hidden_size, output_size)
    x1 = jax.random.normal(k_x1, (B, S, input_size), jnp.float32)
    x2 = jax.random.normal(k_x2, (B, S, input_size), jnp.float32)

    ref = reference_forward(x1, x2, params)

    # 1) f32 compute path: tight correctness check of the fused/tiled kernel.
    packed_f32 = pack_params(params, compute_dtype=jnp.float32)
    out_f32 = jax.block_until_ready(lsn_ff_linear_forward(x1, x2, packed_f32))
    assert out_f32.shape == (B, S, 2 * output_size), out_f32.shape
    assert jnp.allclose(out_f32, ref, atol=2e-4, rtol=2e-4), "f32 mismatch"

    # 2) bf16 operands with f32 MXU accumulation (the perf configuration).
    packed_bf16 = pack_params(params, compute_dtype=jnp.bfloat16)
    out_bf16 = jax.block_until_ready(lsn_ff_linear_forward(x1, x2, packed_bf16))
    assert out_bf16.shape == (B, S, 2 * output_size), out_bf16.shape
    assert jnp.allclose(out_bf16, ref, atol=5e-2, rtol=5e-2), "bf16 mismatch"

    # 3) Larger shape: exercises the multi-step pipelined grid + row padding.
    B2, S2 = 4, 300                      # M = 1200, not a multiple of the tile
    kx1b, kx2b = jax.random.split(jax.random.PRNGKey(1))
    x1b = jax.random.normal(kx1b, (B2, S2, input_size), jnp.float32)
    x2b = jax.random.normal(kx2b, (B2, S2, input_size), jnp.float32)
    refb = reference_forward(x1b, x2b, params)
    outb = jax.block_until_ready(
        lsn_ff_linear_forward(x1b, x2b, packed_f32, tile_m=256))
    assert outb.shape == (B2, S2, 2 * output_size), outb.shape
    assert jnp.allclose(outb, refb, atol=2e-4, rtol=2e-4), "tiled mismatch"

    print("KERNEL_OK")
</pallas_src>

<mosaic_0001>
module attributes {stable_mosaic.version = 11 : i64} {
  func.func @_lsn_ff_kernel(%arg0: i32, %arg1: memref<16x16xf32, #tpu.memory_space<vmem>>, %arg2: memref<16x16xf32, #tpu.memory_space<vmem>>, %arg3: memref<16x32xf32, #tpu.memory_space<vmem>>, %arg4: memref<32x32xf32, #tpu.memory_space<vmem>>, %arg5: memref<32x32xf32, #tpu.memory_space<vmem>>, %arg6: memref<32x32xf32, #tpu.memory_space<vmem>>, %arg7: memref<32x32xf32, #tpu.memory_space<vmem>>, %arg8: memref<32x64xf32, #tpu.memory_space<vmem>>, %arg9: memref<64x2xf32, #tpu.memory_space<vmem>>, %arg10: memref<6x64xf32, #tpu.memory_space<vmem>>, %arg11: memref<16x2xf32, #tpu.memory_space<vmem>>) attributes {dimension_semantics = [#tpu.dimension_semantics<parallel>], iteration_bounds = array<i64: 1>, scalar_prefetch = 0 : i64, scratch_operands = 0 : i64, tpu.core_type = #tpu.core_type<tc>, window_params = [{transform_indices = @transform_0, window_bounds = array<i64: 16, 16>}, {transform_indices = @transform_1, window_bounds = array<i64: 16, 16>}, {pipeline_mode = #tpu.pipeline_mode<synchronous>, transform_indices = @transform_2, window_bounds = array<i64: 16, 32>}, {pipeline_mode = #tpu.pipeline_mode<synchronous>, transform_indices = @transform_3, window_bounds = array<i64: 32, 32>}, {pipeline_mode = #tpu.pipeline_mode<synchronous>, transform_indices = @transform_4, window_bounds = array<i64: 32, 32>}, {pipeline_mode = #tpu.pipeline_mode<synchronous>, transform_indices = @transform_5, window_bounds = array<i64: 32, 32>}, {pipeline_mode = #tpu.pipeline_mode<synchronous>, transform_indices = @transform_6, window_bounds = array<i64: 32, 32>}, {pipeline_mode = #tpu.pipeline_mode<synchronous>, transform_indices = @transform_7, window_bounds = array<i64: 32, 64>}, {pipeline_mode = #tpu.pipeline_mode<synchronous>, transform_indices = @transform_8, window_bounds = array<i64: 64, 2>}, {pipeline_mode = #tpu.pipeline_mode<synchronous>, transform_indices = @transform_9, window_bounds = array<i64: 6, 64>}, {transform_indices = @transform_10, window_bounds = array<i64: 16, 2>}]} {
    %c0 = arith.constant 0 : index
    %c0_0 = arith.constant 0 : index
    %0 = vector.load %arg10[%c0, %c0_0] : memref<6x64xf32, #tpu.memory_space<vmem>>, vector<1x32xf32>
    %c1 = arith.constant 1 : index
    %c0_1 = arith.constant 0 : index
    %1 = vector.load %arg10[%c1, %c0_1] : memref<6x64xf32, #tpu.memory_space<vmem>>, vector<1x32xf32>
    %c2 = arith.constant 2 : index
    %c0_2 = arith.constant 0 : index
    %2 = vector.load %arg10[%c2, %c0_2] : memref<6x64xf32, #tpu.memory_space<vmem>>, vector<1x32xf32>
    %c3 = arith.constant 3 : index
    %c0_3 = arith.constant 0 : index
    %3 = vector.load %arg10[%c3, %c0_3] : memref<6x64xf32, #tpu.memory_space<vmem>>, vector<1x32xf32>
    %c4 = arith.constant 4 : index
    %c0_4 = arith.constant 0 : index
    %4 = vector.load %arg10[%c4, %c0_4] : memref<6x64xf32, #tpu.memory_space<vmem>>, vector<1x64xf32>
    %c5 = arith.constant 5 : index
    %c0_5 = arith.constant 0 : index
    %5 = vector.load %arg10[%c5, %c0_5] : memref<6x64xf32, #tpu.memory_space<vmem>>, vector<1x2xf32>
    %c0_6 = arith.constant 0 : index
    %c0_7 = arith.constant 0 : index
    %6 = vector.load %arg1[%c0_6, %c0_7] : memref<16x16xf32, #tpu.memory_space<vmem>>, vector<16x16xf32>
    %c0_8 = arith.constant 0 : index
    %c0_9 = arith.constant 0 : index
    %7 = vector.load %arg2[%c0_8, %c0_9] : memref<16x16xf32, #tpu.memory_space<vmem>>, vector<16x16xf32>
    %8 = tpu.concatenate %6, %7 in 0 : vector<16x16xf32>, vector<16x16xf32> -> vector<32x16xf32>
    %c0_10 = arith.constant 0 : index
    %c0_11 = arith.constant 0 : index
    %9 = vector.load %arg3[%c0_10, %c0_11] : memref<16x32xf32, #tpu.memory_space<vmem>>, vector<16x32xf32>
    %cst = arith.constant dense<0.000000e+00> : vector<32x32xf32>
    %10 = tpu.matmul %8, %9, %cst {dimension_numbers = #tpu.dot_dimension_numbers<[1], [0], [0], [1], [0, 0, 1, 1], [], []>} : vector<32x16xf32>, vector<16x32xf32>, vector<32x32xf32> -> vector<32x32xf32>
    %11 = vector.broadcast %0 : vector<1x32xf32> to vector<32x32xf32>
    %12 = arith.addf %10, %11 : vector<32x32xf32>
    %c0_12 = arith.constant 0 : index
    %c0_13 = arith.constant 0 : index
    %13 = vector.load %arg4[%c0_12, %c0_13] : memref<32x32xf32, #tpu.memory_space<vmem>>, vector<32x32xf32>
    %cst_14 = arith.constant dense<0.000000e+00> : vector<32x32xf32>
    %14 = tpu.matmul %12, %13, %cst_14 {dimension_numbers = #tpu.dot_dimension_numbers<[1], [0], [0], [1], [0, 0, 1, 1], [], []>} : vector<32x32xf32>, vector<32x32xf32>, vector<32x32xf32> -> vector<32x32xf32>
    %15 = vector.broadcast %1 : vector<1x32xf32> to vector<32x32xf32>
    %16 = arith.addf %14, %15 : vector<32x32xf32>
    %17 = vector.extract_strided_slice %16 {offsets = [0, 0], sizes = [16, 32], strides = [1, 1]} : vector<32x32xf32> to vector<16x32xf32>
    %18 = vector.extract_strided_slice %16 {offsets = [16, 0], sizes = [16, 32], strides = [1, 1]} : vector<32x32xf32> to vector<16x32xf32>
    %c0_15 = arith.constant 0 : index
    %c0_16 = arith.constant 0 : index
    %19 = vector.load %arg5[%c0_15, %c0_16] : memref<32x32xf32, #tpu.memory_space<vmem>>, vector<32x32xf32>
    %cst_17 = arith.constant dense<0.000000e+00> : vector<16x32xf32>
    %20 = tpu.matmul %17, %19, %cst_17 {dimension_numbers = #tpu.dot_dimension_numbers<[1], [0], [0], [1], [0, 0, 1, 1], [], []>} : vector<16x32xf32>, vector<32x32xf32>, vector<16x32xf32> -> vector<16x32xf32>
    %c0_18 = arith.constant 0 : index
    %c0_19 = arith.constant 0 : index
    %21 = vector.load %arg6[%c0_18, %c0_19] : memref<32x32xf32, #tpu.memory_space<vmem>>, vector<32x32xf32>
    %cst_20 = arith.constant dense<0.000000e+00> : vector<16x32xf32>
    %22 = tpu.matmul %18, %21, %cst_20 {dimension_numbers = #tpu.dot_dimension_numbers<[1], [0], [0], [1], [0, 0, 1, 1], [], []>} : vector<16x32xf32>, vector<32x32xf32>, vector<16x32xf32> -> vector<16x32xf32>
    %23 = arith.addf %20, %22 : vector<16x32xf32>
    %24 = vector.broadcast %2 : vector<1x32xf32> to vector<16x32xf32>
    %25 = arith.addf %23, %24 : vector<16x32xf32>
    %c0_21 = arith.constant 0 : index
    %c0_22 = arith.constant 0 : index
    %26 = vector.load %arg7[%c0_21, %c0_22] : memref<32x32xf32, #tpu.memory_space<vmem>>, vector<32x32xf32>
    %cst_23 = arith.constant dense<0.000000e+00> : vector<16x32xf32>
    %27 = tpu.matmul %25, %26, %cst_23 {dimension_numbers = #tpu.dot_dimension_numbers<[1], [0], [0], [1], [0, 0, 1, 1], [], []>} : vector<16x32xf32>, vector<32x32xf32>, vector<16x32xf32> -> vector<16x32xf32>
    %28 = vector.broadcast %3 : vector<1x32xf32> to vector<16x32xf32>
    %29 = arith.addf %27, %28 : vector<16x32xf32>
    %c0_24 = arith.constant 0 : index
    %c0_25 = arith.constant 0 : index
    %30 = vector.load %arg8[%c0_24, %c0_25] : memref<32x64xf32, #tpu.memory_space<vmem>>, vector<32x64xf32>
    %cst_26 = arith.constant dense<0.000000e+00> : vector<16x64xf32>
    %31 = tpu.matmul %29, %30, %cst_26 {dimension_numbers = #tpu.dot_dimension_numbers<[1], [0], [0], [1], [0, 0, 1, 1], [], []>} : vector<16x32xf32>, vector<32x64xf32>, vector<16x64xf32> -> vector<16x64xf32>
    %32 = vector.broadcast %4 : vector<1x64xf32> to vector<16x64xf32>
    %33 = arith.addf %31, %32 : vector<16x64xf32>
    %c0_27 = arith.constant 0 : index
    %c0_28 = arith.constant 0 : index
    %34 = vector.load %arg9[%c0_27, %c0_28] : memref<64x2xf32, #tpu.memory_space<vmem>>, vector<64x2xf32>
    %cst_29 = arith.constant dense<0.000000e+00> : vector<16x2xf32>
    %35 = tpu.matmul %33, %34, %cst_29 {dimension_numbers = #tpu.dot_dimension_numbers<[1], [0], [0], [1], [0, 0, 1, 1], [], []>} : vector<16x64xf32>, vector<64x2xf32>, vector<16x2xf32> -> vector<16x2xf32>
    %36 = vector.broadcast %5 : vector<1x2xf32> to vector<16x2xf32>
    %37 = arith.addf %35, %36 : vector<16x2xf32>
    %c0_30 = arith.constant 0 : index
    %c0_31 = arith.constant 0 : index
    %38 = vector.load %arg11[%c0_30, %c0_31] : memref<16x2xf32, #tpu.memory_space<vmem>>, vector<16x2xf32>
    tpu.vector_store %arg11[%c0_30, %c0_31], %37 {strides = array<i32>} : memref<16x2xf32, #tpu.memory_space<vmem>>, vector<16x2xf32>,
    return
  }
  func.func @transform_0(%arg0: i32) -> (i32, i32) {
    %c0_i32 = arith.constant 0 : i32
    %c0_i32_0 = arith.constant 0 : i32
    return %arg0, %c0_i32 : i32, i32
  }
  func.func @transform_1(%arg0: i32) -> (i32, i32) {
    %c0_i32 = arith.constant 0 : i32
    %c0_i32_0 = arith.constant 0 : i32
    return %arg0, %c0_i32 : i32, i32
  }
  func.func @transform_2(%arg0: i32) -> (i32, i32) {
    %c0_i32 = arith.constant 0 : i32
    %c0_i32_0 = arith.constant 0 : i32
    %c0_i32_1 = arith.constant 0 : i32
    return %c0_i32, %c0_i32_0 : i32, i32
  }
  func.func @transform_3(%arg0: i32) -> (i32, i32) {
    %c0_i32 = arith.constant 0 : i32
    %c0_i32_0 = arith.constant 0 : i32
    %c0_i32_1 = arith.constant 0 : i32
    return %c0_i32, %c0_i32_0 : i32, i32
  }
  func.func @transform_4(%arg0: i32) -> (i32, i32) {
    %c0_i32 = arith.constant 0 : i32
    %c0_i32_0 = arith.constant 0 : i32
    %c0_i32_1 = arith.constant 0 : i32
    return %c0_i32, %c0_i32_0 : i32, i32
  }
  func.func @transform_5(%arg0: i32) -> (i32, i32) {
    %c0_i32 = arith.constant 0 : i32
    %c0_i32_0 = arith.constant 0 : i32
    %c0_i32_1 = arith.constant 0 : i32
    return %c0_i32, %c0_i32_0 : i32, i32
  }
  func.func @transform_6(%arg0: i32) -> (i32, i32) {
    %c0_i32 = arith.constant 0 : i32
    %c0_i32_0 = arith.constant 0 : i32
    %c0_i32_1 = arith.constant 0 : i32
    return %c0_i32, %c0_i32_0 : i32, i32
  }
  func.func @transform_7(%arg0: i32) -> (i32, i32) {
    %c0_i32 = arith.constant 0 : i32
    %c0_i32_0 = arith.constant 0 : i32
    %c0_i32_1 = arith.constant 0 : i32
    return %c0_i32, %c0_i32_0 : i32, i32
  }
  func.func @transform_8(%arg0: i32) -> (i32, i32) {
    %c0_i32 = arith.constant 0 : i32
    %c0_i32_0 = arith.constant 0 : i32
    %c0_i32_1 = arith.constant 0 : i32
    return %c0_i32, %c0_i32_0 : i32, i32
  }
  func.func @transform_9(%arg0: i32) -> (i32, i32) {
    %c0_i32 = arith.constant 0 : i32
    %c0_i32_0 = arith.constant 0 : i32
    %c0_i32_1 = arith.constant 0 : i32
    return %c0_i32, %c0_i32_0 : i32, i32
  }
  func.func @transform_10(%arg0: i32) -> (i32, i32) {
    %c0_i32 = arith.constant 0 : i32
    %c0_i32_0 = arith.constant 0 : i32
    return %arg0, %c0_i32 : i32, i32
  }
}

module attributes {stable_mosaic.version = 11 : i64} {
  func.func @_lsn_ff_kernel(%arg0: i32, %arg1: memref<16x16xf32, #tpu.memory_space<vmem>>, %arg2: memref<16x16xf32, #tpu.memory_space<vmem>>, %arg3: memref<16x32xf32, #tpu.memory_space<vmem>>, %arg4: memref<32x32xf32, #tpu.memory_space<vmem>>, %arg5: memref<32x32xf32, #tpu.memory_space<vmem>>, %arg6: memref<32x32xf32, #tpu.memory_space<vmem>>, %arg7: memref<32x32xf32, #tpu.memory_space<vmem>>, %arg8: memref<32x64xf32, #tpu.memory_space<vmem>>, %arg9: memref<64x2xf32, #tpu.memory_space<vmem>>, %arg10: memref<6x64xf32, #tpu.memory_space<vmem>>, %arg11: memref<16x2xf32, #tpu.memory_space<vmem>>) attributes {dimension_semantics = [#tpu.dimension_semantics<parallel>], iteration_bounds = array<i64: 1>, scalar_prefetch = 0 : i64, scratch_operands = 0 : i64, tpu.core_type = #tpu.core_type<tc>, window_params = [{transform_indices = @transform_0, window_bounds = array<i64: 16, 16>}, {transform_indices = @transform_1, window_bounds = array<i64: 16, 16>}, {pipeline_mode = #tpu.pipeline_mode<synchronous>, transform_indices = @transform_2, window_bounds = array<i64: 16, 32>}, {pipeline_mode = #tpu.pipeline_mode<synchronous>, transform_indices = @transform_3, window_bounds = array<i64: 32, 32>}, {pipeline_mode = #tpu.pipeline_mode<synchronous>, transform_indices = @transform_4, window_bounds = array<i64: 32, 32>}, {pipeline_mode = #tpu.pipeline_mode<synchronous>, transform_indices = @transform_5, window_bounds = array<i64: 32, 32>}, {pipeline_mode = #tpu.pipeline_mode<synchronous>, transform_indices = @transform_6, window_bounds = array<i64: 32, 32>}, {pipeline_mode = #tpu.pipeline_mode<synchronous>, transform_indices = @transform_7, window_bounds = array<i64: 32, 64>}, {pipeline_mode = #tpu.pipeline_mode<synchronous>, transform_indices = @transform_8, window_bounds = array<i64: 64, 2>}, {pipeline_mode = #tpu.pipeline_mode<synchronous>, transform_indices = @transform_9, window_bounds = array<i64: 6, 64>}, {transform_indices = @transform_10, window_bounds = array<i64: 16, 2>}]} {
    %c0 = arith.constant 0 : index
    %c0_0 = arith.constant 0 : index
    %0 = vector.load %arg10[%c0, %c0_0] : memref<6x64xf32, #tpu.memory_space<vmem>>, vector<1x32xf32>
    %c1 = arith.constant 1 : index
    %c0_1 = arith.constant 0 : index
    %1 = vector.load %arg10[%c1, %c0_1] : memref<6x64xf32, #tpu.memory_space<vmem>>, vector<1x32xf32>
    %c2 = arith.constant 2 : index
    %c0_2 = arith.constant 0 : index
    %2 = vector.load %arg10[%c2, %c0_2] : memref<6x64xf32, #tpu.memory_space<vmem>>, vector<1x32xf32>
    %c3 = arith.constant 3 : index
    %c0_3 = arith.constant 0 : index
    %3 = vector.load %arg10[%c3, %c0_3] : memref<6x64xf32, #tpu.memory_space<vmem>>, vector<1x32xf32>
    %c4 = arith.constant 4 : index
    %c0_4 = arith.constant 0 : index
    %4 = vector.load %arg10[%c4, %c0_4] : memref<6x64xf32, #tpu.memory_space<vmem>>, vector<1x64xf32>
    %c5 = arith.constant 5 : index
    %c0_5 = arith.constant 0 : index
    %5 = vector.load %arg10[%c5, %c0_5] : memref<6x64xf32, #tpu.memory_space<vmem>>, vector<1x2xf32>
    %c0_6 = arith.constant 0 : index
    %c0_7 = arith.constant 0 : index
    %6 = vector.load %arg1[%c0_6, %c0_7] : memref<16x16xf32, #tpu.memory_space<vmem>>, vector<16x16xf32>
    %c0_8 = arith.constant 0 : index
    %c0_9 = arith.constant 0 : index
    %7 = vector.load %arg2[%c0_8, %c0_9] : memref<16x16xf32, #tpu.memory_space<vmem>>, vector<16x16xf32>
    %8 = tpu.concatenate %6, %7 in 0 : vector<16x16xf32>, vector<16x16xf32> -> vector<32x16xf32>
    %c0_10 = arith.constant 0 : index
    %c0_11 = arith.constant 0 : index
    %9 = vector.load %arg3[%c0_10, %c0_11] : memref<16x32xf32, #tpu.memory_space<vmem>>, vector<16x32xf32>
    %cst = arith.constant dense<0.000000e+00> : vector<32x32xf32>
    %10 = tpu.matmul %8, %9, %cst {dimension_numbers = #tpu.dot_dimension_numbers<[1], [0], [0], [1], [0, 0, 1, 1], [], []>} : vector<32x16xf32>, vector<16x32xf32>, vector<32x32xf32> -> vector<32x32xf32>
    %11 = vector.broadcast %0 : vector<1x32xf32> to vector<32x32xf32>
    %12 = arith.addf %10, %11 : vector<32x32xf32>
    %c0_12 = arith.constant 0 : index
    %c0_13 = arith.constant 0 : index
    %13 = vector.load %arg4[%c0_12, %c0_13] : memref<32x32xf32, #tpu.memory_space<vmem>>, vector<32x32xf32>
    %cst_14 = arith.constant dense<0.000000e+00> : vector<32x32xf32>
    %14 = tpu.matmul %12, %13, %cst_14 {dimension_numbers = #tpu.dot_dimension_numbers<[1], [0], [0], [1], [0, 0, 1, 1], [], []>} : vector<32x32xf32>, vector<32x32xf32>, vector<32x32xf32> -> vector<32x32xf32>
    %15 = vector.broadcast %1 : vector<1x32xf32> to vector<32x32xf32>
    %16 = arith.addf %14, %15 : vector<32x32xf32>
    %17 = vector.extract_strided_slice %16 {offsets = [0, 0], sizes = [16, 32], strides = [1, 1]} : vector<32x32xf32> to vector<16x32xf32>
    %18 = vector.extract_strided_slice %16 {offsets = [16, 0], sizes = [16, 32], strides = [1, 1]} : vector<32x32xf32> to vector<16x32xf32>
    %c0_15 = arith.constant 0 : index
    %c0_16 = arith.constant 0 : index
    %19 = vector.load %arg5[%c0_15, %c0_16] : memref<32x32xf32, #tpu.memory_space<vmem>>, vector<32x32xf32>
    %cst_17 = arith.constant dense<0.000000e+00> : vector<16x32xf32>
    %20 = tpu.matmul %17, %19, %cst_17 {dimension_numbers = #tpu.dot_dimension_numbers<[1], [0], [0], [1], [0, 0, 1, 1], [], []>} : vector<16x32xf32>, vector<32x32xf32>, vector<16x32xf32> -> vector<16x32xf32>
    %c0_18 = arith.constant 0 : index
    %c0_19 = arith.constant 0 : index
    %21 = vector.load %arg6[%c0_18, %c0_19] : memref<32x32xf32, #tpu.memory_space<vmem>>, vector<32x32xf32>
    %cst_20 = arith.constant dense<0.000000e+00> : vector<16x32xf32>
    %22 = tpu.matmul %18, %21, %cst_20 {dimension_numbers = #tpu.dot_dimension_numbers<[1], [0], [0], [1], [0, 0, 1, 1], [], []>} : vector<16x32xf32>, vector<32x32xf32>, vector<16x32xf32> -> vector<16x32xf32>
    %23 = arith.addf %20, %22 : vector<16x32xf32>
    %24 = vector.broadcast %2 : vector<1x32xf32> to vector<16x32xf32>
    %25 = arith.addf %23, %24 : vector<16x32xf32>
    %c0_21 = arith.constant 0 : index
    %c0_22 = arith.constant 0 : index
    %26 = vector.load %arg7[%c0_21, %c0_22] : memref<32x32xf32, #tpu.memory_space<vmem>>, vector<32x32xf32>
    %cst_23 = arith.constant dense<0.000000e+00> : vector<16x32xf32>
    %27 = tpu.matmul %25, %26, %cst_23 {dimension_numbers = #tpu.dot_dimension_numbers<[1], [0], [0], [1], [0, 0, 1, 1], [], []>} : vector<16x32xf32>, vector<32x32xf32>, vector<16x32xf32> -> vector<16x32xf32>
    %28 = vector.broadcast %3 : vector<1x32xf32> to vector<16x32xf32>
    %29 = arith.addf %27, %28 : vector<16x32xf32>
    %c0_24 = arith.constant 0 : index
    %c0_25 = arith.constant 0 : index
    %30 = vector.load %arg8[%c0_24, %c0_25] : memref<32x64xf32, #tpu.memory_space<vmem>>, vector<32x64xf32>
    %cst_26 = arith.constant dense<0.000000e+00> : vector<16x64xf32>
    %31 = tpu.matmul %29, %30, %cst_26 {dimension_numbers = #tpu.dot_dimension_numbers<[1], [0], [0], [1], [0, 0, 1, 1], [], []>} : vector<16x32xf32>, vector<32x64xf32>, vector<16x64xf32> -> vector<16x64xf32>
    %32 = vector.broadcast %4 : vector<1x64xf32> to vector<16x64xf32>
    %33 = arith.addf %31, %32 : vector<16x64xf32>
    %c0_27 = arith.constant 0 : index
    %c0_28 = arith.constant 0 : index
    %34 = vector.load %arg9[%c0_27, %c0_28] : memref<64x2xf32, #tpu.memory_space<vmem>>, vector<64x2xf32>
    %cst_29 = arith.constant dense<0.000000e+00> : vector<16x2xf32>
    %35 = tpu.matmul %33, %34, %cst_29 {dimension_numbers = #tpu.dot_dimension_numbers<[1], [0], [0], [1], [0, 0, 1, 1], [], []>} : vector<16x64xf32>, vector<64x2xf32>, vector<16x2xf32> -> vector<16x2xf32>
    %36 = vector.broadcast %5 : vector<1x2xf32> to vector<16x2xf32>
    %37 = arith.addf %35, %36 : vector<16x2xf32>
    %c0_30 = arith.constant 0 : index
    %c0_31 = arith.constant 0 : index
    %38 = vector.load %arg11[%c0_30, %c0_31] : memref<16x2xf32, #tpu.memory_space<vmem>>, vector<16x2xf32>
    tpu.vector_store %arg11[%c0_30, %c0_31], %37 {strides = array<i32>} : memref<16x2xf32, #tpu.memory_space<vmem>>, vector<16x2xf32>,
    return
  }
  func.func @transform_0(%arg0: i32) -> (i32, i32) {
    %c0_i32 = arith.constant 0 : i32
    %c0_i32_0 = arith.constant 0 : i32
    return %arg0, %c0_i32 : i32, i32
  }
  func.func @transform_1(%arg0: i32) -> (i32, i32) {
    %c0_i32 = arith.constant 0 : i32
    %c0_i32_0 = arith.constant 0 : i32
    return %arg0, %c0_i32 : i32, i32
  }
  func.func @transform_2(%arg0: i32) -> (i32, i32) {
    %c0_i32 = arith.constant 0 : i32
    %c0_i32_0 = arith.constant 0 : i32
    %c0_i32_1 = arith.constant 0 : i32
    return %c0_i32, %c0_i32_0 : i32, i32
  }
  func.func @transform_3(%arg0: i32) -> (i32, i32) {
    %c0_i32 = arith.constant 0 : i32
    %c0_i32_0 = arith.constant 0 : i32
    %c0_i32_1 = arith.constant 0 : i32
    return %c0_i32, %c0_i32_0 : i32, i32
  }
  func.func @transform_4(%arg0: i32) -> (i32, i32) {
    %c0_i32 = arith.constant 0 : i32
    %c0_i32_0 = arith.constant 0 : i32
    %c0_i32_1 = arith.constant 0 : i32
    return %c0_i32, %c0_i32_0 : i32, i32
  }
  func.func @transform_5(%arg0: i32) -> (i32, i32) {
    %c0_i32 = arith.constant 0 : i32
    %c0_i32_0 = arith.constant 0 : i32
    %c0_i32_1 = arith.constant 0 : i32
    return %c0_i32, %c0_i32_0 : i32, i32
  }
  func.func @transform_6(%arg0: i32) -> (i32, i32) {
    %c0_i32 = arith.constant 0 : i32
    %c0_i32_0 = arith.constant 0 : i32
    %c0_i32_1 = arith.constant 0 : i32
    return %c0_i32, %c0_i32_0 : i32, i32
  }
  func.func @transform_7(%arg0: i32) -> (i32, i32) {
    %c0_i32 = arith.constant 0 : i32
    %c0_i32_0 = arith.constant 0 : i32
    %c0_i32_1 = arith.constant 0 : i32
    return %c0_i32, %c0_i32_0 : i32, i32
  }
  func.func @transform_8(%arg0: i32) -> (i32, i32) {
    %c0_i32 = arith.constant 0 : i32
    %c0_i32_0 = arith.constant 0 : i32
    %c0_i32_1 = arith.constant 0 : i32
    return %c0_i32, %c0_i32_0 : i32, i32
  }
  func.func @transform_9(%arg0: i32) -> (i32, i32) {
    %c0_i32 = arith.constant 0 : i32
    %c0_i32_0 = arith.constant 0 : i32
    %c0_i32_1 = arith.constant 0 : i32
    return %c0_i32, %c0_i32_0 : i32, i32
  }
  func.func @transform_10(%arg0: i32) -> (i32, i32) {
    %c0_i32 = arith.constant 0 : i32
    %c0_i32_0 = arith.constant 0 : i32
    return %arg0, %c0_i32 : i32, i32
  }
}

</mosaic_0001>

<llo_original>
// kernel: tpu_custom_call.1
$region0: #{tpu_custom_call.1}
  #allocation0 [shape = 'u32[]', space=smem, size = 0x4, offset = 0x4, fixed_abs, tag = 'smem constant byte address 0x4 - core index']
  #allocation1 [shape = 'u32[144,128]{1,0:T(1,128)}', space=vmem, size = 0x12000, scoped, tag = 'internal scratch']
  %s0 = inlined_call_operand.hbm [shape: f32[16,16], index: 0, kind: input, shape index: {}]
  %s1 = inlined_call_operand.hbm [shape: f32[16,16], index: 1, kind: input, shape index: {}]
  %s2 = inlined_call_operand.hbm [shape: f32[16,32], index: 2, kind: input, shape index: {}]
  %s3 = inlined_call_operand.vmem [shape: f32[32,32], index: 3, kind: input, shape index: {}]
  %s4 = inlined_call_operand.vmem [shape: f32[32,32], index: 4, kind: input, shape index: {}]
  %s5 = inlined_call_operand.hbm [shape: f32[32,32], index: 5, kind: input, shape index: {}]
  %s6 = inlined_call_operand.hbm [shape: f32[32,32], index: 6, kind: input, shape index: {}]
  %s7 = inlined_call_operand.hbm [shape: f32[32,64], index: 7, kind: input, shape index: {}]
  %s8 = inlined_call_operand.vmem [shape: f32[64,2], index: 8, kind: input, shape index: {}]
  %s9 = inlined_call_operand.vmem [shape: f32[6,64], index: 9, kind: input, shape index: {}]
  %s10 = inlined_call_operand.vmem [shape: f32[16,2], index: 10, kind: output, shape index: {}]
  %s11 = sld [smem:[#allocation0]]
  $region74: #{tpu_custom_call.1} parent=0
    _
  %s13 = ssub.s32 1, %s11
  %s14 = scalar_select 0, %s13, %s11
  $region1: #{tpu_custom_call.1} parent=0
    #allocation2 [shape = 'u8[8192]{0}', space=vmem, size = 0x2000, scoped, tag = 'input window, operand 0, single buffered']
    #allocation3 [shape = 's32[1]{0}', space=sflag, size = 0x4, scoped, tag = 'scoped memory for tpu_custom_call.1']
    #allocation4 [shape = 'u8[8192]{0}', space=vmem, size = 0x2000, scoped, tag = 'input window, operand 1, single buffered']
    #allocation5 [shape = 's32[1]{0}', space=sflag, size = 0x4, scoped, tag = 'scoped memory for tpu_custom_call.1']
    #allocation6 [shape = 'u8[8192]{0}', space=vmem, size = 0x2000, scoped, tag = 'input window, operand 2, single buffered']
    #allocation7 [shape = 'u8[16384]{0}', space=vmem, size = 0x4000, scoped, tag = 'input window, operand 5, single buffered']
    #allocation8 [shape = 's32[1]{0}', space=sflag, size = 0x4, scoped, tag = 'scoped memory for tpu_custom_call.1']
    #allocation9 [shape = 'u8[16384]{0}', space=vmem, size = 0x4000, scoped, tag = 'input window, operand 6, single buffered']
    #allocation10 [shape = 'u8[16384]{0}', space=vmem, size = 0x4000, scoped, tag = 'input window, operand 7, single buffered']
    #allocation11 [shape = 's32[1]{0}', space=sflag, size = 0x4, scoped, tag = 'scoped memory for tpu_custom_call.1']
    %15 = vsyncpa [#allocation3], 0
    %16 = vsyncpa [#allocation5], 0
    %17 = vsyncpa [#allocation8], 0
    %18 = vsyncpa [#allocation11], 0
    // Predicated region
    $region2: #{tpu_custom_call.1} parent=1 // pred_check
      _
    $region3: #{tpu_custom_call.1} parent=1 // pred_check_branch
      %20 = sbr.rel (0) target = $region5
    $region4: #{tpu_custom_call.1} parent=1 // pred_region
      %s22 = ssub.s32 256, 256
      %23 = vsyncadd [#allocation3], %s22
      %s24 = sshll.u32 [#allocation2], 4
      %s25 = int_to_ptr.vmem [resolvable:$true] %s24
      %30 = dma.hbm_to_vmem [thread:$0]  %s0, 256, %s25, [#allocation3], 128, 128, 8
    $region5: #{tpu_custom_call.1} parent=1 // pred_fallthru
      _
    // Predicated region
    $region6: #{tpu_custom_call.1} parent=1 // pred_check
      _
    $region7: #{tpu_custom_call.1} parent=1 // pred_check_branch
      %32 = sbr.rel (0) target = $region9
    $region8: #{tpu_custom_call.1} parent=1 // pred_region
      %s34 = ssub.s32 256, 256
      %35 = vsyncadd [#allocation5], %s34
      %s36 = sshll.u32 [#allocation4], 4
      %s37 = int_to_ptr.vmem [resolvable:$true] %s36
      %42 = dma.hbm_to_vmem [thread:$0]  %s1, 256, %s37, [#allocation5], 128, 128, 8
    $region9: #{tpu_custom_call.1} parent=1 // pred_fallthru
      _
    // Predicated region
    $region10: #{tpu_custom_call.1} parent=1 // pred_check
      _
    $region11: #{tpu_custom_call.1} parent=1 // pred_check_branch
      %44 = sbr.rel (0) target = $region13
    $region12: #{tpu_custom_call.1} parent=1 // pred_region
      %s46 = ssub.s32 256, 256
      %47 = vsyncadd [#allocation5], %s46
      %s48 = sshll.u32 [#allocation6], 4
      %s49 = int_to_ptr.vmem [resolvable:$true] %s48
      %54 = dma.hbm_to_vmem [thread:$0]  %s2, 256, %s49, [#allocation5], 128, 128, 8
    $region13: #{tpu_custom_call.1} parent=1 // pred_fallthru
      _
    // Predicated region
    $region14: #{tpu_custom_call.1} parent=1 // pred_check
      _
    $region15: #{tpu_custom_call.1} parent=1 // pred_check_branch
      %56 = sbr.rel (0) target = $region17
    $region16: #{tpu_custom_call.1} parent=1 // pred_region
      _
    $region17: #{tpu_custom_call.1} parent=1 // pred_fallthru
      _
    // Predicated region
    $region18: #{tpu_custom_call.1} parent=1 // pred_check
      _
    $region19: #{tpu_custom_call.1} parent=1 // pred_check_branch
      %58 = sbr.rel (0) target = $region21
    $region20: #{tpu_custom_call.1} parent=1 // pred_region
      _
    $region21: #{tpu_custom_call.1} parent=1 // pred_fallthru
      _
    // Predicated region
    $region22: #{tpu_custom_call.1} parent=1 // pred_check
      _
    $region23: #{tpu_custom_call.1} parent=1 // pred_check_branch
      %60 = sbr.rel (0) target = $region25
    $region24: #{tpu_custom_call.1} parent=1 // pred_region
      %s62 = ssub.s32 512, 512
      %63 = vsyncadd [#allocation8], %s62
      %s64 = sshll.u32 [#allocation7], 4
      %s65 = int_to_ptr.vmem [resolvable:$true] %s64
      %70 = dma.hbm_to_vmem [thread:$0]  %s5, 512, %s65, [#allocation8], 128, 128, 8
    $region25: #{tpu_custom_call.1} parent=1 // pred_fallthru
      _
    // Predicated region
    $region26: #{tpu_custom_call.1} parent=1 // pred_check
      _
    $region27: #{tpu_custom_call.1} parent=1 // pred_check_branch
      %72 = sbr.rel (0) target = $region29
    $region28: #{tpu_custom_call.1} parent=1 // pred_region
      %s74 = ssub.s32 512, 512
      %75 = vsyncadd [#allocation8], %s74
      %s76 = sshll.u32 [#allocation9], 4
      %s77 = int_to_ptr.vmem [resolvable:$true] %s76
      %82 = dma.hbm_to_vmem [thread:$0]  %s6, 512, %s77, [#allocation8], 128, 128, 8
    $region29: #{tpu_custom_call.1} parent=1 // pred_fallthru
      _
    // Predicated region
    $region30: #{tpu_custom_call.1} parent=1 // pred_check
      _
    $region31: #{tpu_custom_call.1} parent=1 // pred_check_branch
      %84 = sbr.rel (0) target = $region33
    $region32: #{tpu_custom_call.1} parent=1 // pred_region
      %s86 = ssub.s32 512, 512
      %87 = vsyncadd [#allocation11], %s86
      %s88 = sshll.u32 [#allocation10], 4
      %s89 = int_to_ptr.vmem [resolvable:$true] %s88
      %94 = dma.hbm_to_vmem [thread:$0]  %s7, 512, %s89, [#allocation11], 128, 128, 8
    $region33: #{tpu_custom_call.1} parent=1 // pred_fallthru
      _
    // Predicated region
    $region34: #{tpu_custom_call.1} parent=1 // pred_check
      _
    $region35: #{tpu_custom_call.1} parent=1 // pred_check_branch
      %96 = sbr.rel (0) target = $region37
    $region36: #{tpu_custom_call.1} parent=1 // pred_region
      _
    $region37: #{tpu_custom_call.1} parent=1 // pred_fallthru
      _
    // Predicated region
    $region38: #{tpu_custom_call.1} parent=1 // pred_check
      _
    $region39: #{tpu_custom_call.1} parent=1 // pred_check_branch
      %98 = sbr.rel (0) target = $region41
    $region40: #{tpu_custom_call.1} parent=1 // pred_region
      _
    $region41: #{tpu_custom_call.1} parent=1 // pred_fallthru
      _
    // Predicated region
    $region42: #{tpu_custom_call.1} parent=1 // pred_check
      _
    $region43: #{tpu_custom_call.1} parent=1 // pred_check_branch
      %100 = sbr.rel (0) target = $region45
    $region44: #{tpu_custom_call.1} parent=1 // pred_region
      %101 = dma.done [#allocation3], 256
    $region45: #{tpu_custom_call.1} parent=1 // pred_fallthru
      _
    // Predicated region
    $region46: #{tpu_custom_call.1} parent=1 // pred_check
      _
    $region47: #{tpu_custom_call.1} parent=1 // pred_check_branch
      %103 = sbr.rel (0) target = $region49
    $region48: #{tpu_custom_call.1} parent=1 // pred_region
      %104 = dma.done [#allocation5], 256
    $region49: #{tpu_custom_call.1} parent=1 // pred_fallthru
      _
    // Predicated region
    $region50: #{tpu_custom_call.1} parent=1 // pred_check
      _
    $region51: #{tpu_custom_call.1} parent=1 // pred_check_branch
      %106 = sbr.rel (0) target = $region53
    $region52: #{tpu_custom_call.1} parent=1 // pred_region
      %107 = dma.done [#allocation5], 256
    $region53: #{tpu_custom_call.1} parent=1 // pred_fallthru
      _
    // Predicated region
    $region54: #{tpu_custom_call.1} parent=1 // pred_check
      _
    $region55: #{tpu_custom_call.1} parent=1 // pred_check_branch
      %109 = sbr.rel (0) target = $region57
    $region56: #{tpu_custom_call.1} parent=1 // pred_region
      %110 = dma.done [#allocation8], 512
    $region57: #{tpu_custom_call.1} parent=1 // pred_fallthru
      _
    // Predicated region
    $region58: #{tpu_custom_call.1} parent=1 // pred_check
      _
    $region59: #{tpu_custom_call.1} parent=1 // pred_check_branch
      %112 = sbr.rel (0) target = $region61
    $region60: #{tpu_custom_call.1} parent=1 // pred_region
      %113 = dma.done [#allocation8], 512
    $region61: #{tpu_custom_call.1} parent=1 // pred_fallthru
      _
    // Predicated region
    $region62: #{tpu_custom_call.1} parent=1 // pred_check
      _
    $region63: #{tpu_custom_call.1} parent=1 // pred_check_branch
      %115 = sbr.rel (0) target = $region65
    $region64: #{tpu_custom_call.1} parent=1 // pred_region
      %116 = dma.done [#allocation11], 512
    $region65: #{tpu_custom_call.1} parent=1 // pred_fallthru
      _
    %v117 = vld [vmem:[%s9] sm:$0x1]
    %v118 = vld [vmem:[%s9 + $0x1] sm:$0x1]
    %v119 = vld [vmem:[%s9 + $0x2] sm:$0x1]
    %v120 = vld [vmem:[%s9 + $0x3] sm:$0x1]
    %v121 = vld [vmem:[%s9 + $0x4] sm:$0x1]
    %v122 = vld [vmem:[%s9 + $0x5] sm:$0x1]
    %v123 = vld [vmem:[#allocation2] sm:$0xff]
    %v124 = vld [vmem:[#allocation2 + $0x8] sm:$0xff]
    %v125 = vld [vmem:[#allocation4] sm:$0xff]
    %v126 = vld [vmem:[#allocation4 + $0x8] sm:$0xff]
    %v127 = vld [vmem:[#allocation6] sm:$0xff]
    %v128 = vld [vmem:[#allocation6 + $0x8] sm:$0xff]
    %v129 = vlaneseq
    %v130 = vshrl.u32 %v129, 7
    %v131 = vsub.s32 0, %v130
    %v132 = vrot.slane %v117, %v131
    %vm133 = vcmask 130048
    %v135 = vsel %vm133, %v123, 0
    %v138 = vsel %vm133, %v124, 0
    %v141 = vsel %vm133, %v125, 0
    %v144 = vsel %vm133, %v126, 0
    %146 = vmatprep.subr.mxu0 0.0
    %147 = vmatpush1.msra.mxu0 0.0
    %148 = vmatprep.subr.mxu0 0.0
    %149 = vmatpush1.msra.mxu0 0.0
    %150 = vmatprep.subr.mxu0 0.0
    %151 = vmatpush1.msra.mxu0 0.0
    %152 = vmatprep.subr.mxu0 0.0
    %153 = vmatpush1.msra.mxu0 0.0
    %154 = vmatprep.subr.mxu0 0.0
    %155 = vmatpush1.msra.mxu0 0.0
    %156 = vmatprep.subr.mxu0 0.0
    %157 = vmatpush1.msra.mxu0 0.0
    %158 = vmatprep.subr.mxu0 0.0
    %159 = vmatpush1.msra.mxu0 0.0
    %160 = vmatprep.subr.mxu0 0.0
    %161 = vmatpush1.msra.mxu0 0.0
    %162 = vmatprep.subr.mxu0 0.0
    %163 = vmatpush1.msra.mxu0 0.0
    %164 = vmatprep.subr.mxu0 0.0
    %165 = vmatpush1.msra.mxu0 0.0
    %166 = vmatprep.subr.mxu0 0.0
    %167 = vmatpush1.msra.mxu0 0.0
    %168 = vmatprep.subr.mxu0 0.0
    %169 = vmatpush1.msra.mxu0 0.0
    %170 = vmatprep.subr.mxu0 0.0
    %171 = vmatpush1.msra.mxu0 0.0
    %172 = vmatprep.subr.mxu0 0.0
    %173 = vmatpush1.msra.mxu0 0.0
    %174 = vmatprep.subr.mxu0 0.0
    %175 = vmatpush1.msra.mxu0 %v128
    %176 = vmatprep.subr.mxu0 0.0
    %177 = vmatpush1.msra.mxu0 %v127
    %178 = vmatprep.subr.mxu0 0.0
    %179 = vmatpush2.msra.mxu0 0.0
    %180 = vmatprep.subr.mxu0 0.0
    %181 = vmatpush2.msra.mxu0 0.0
    %182 = vmatprep.subr.mxu0 0.0
    %183 = vmatpush2.msra.mxu0 0.0
    %184 = vmatprep.subr.mxu0 0.0
    %185 = vmatpush2.msra.mxu0 0.0
    %186 = vmatprep.subr.mxu0 0.0
    %187 = vmatpush2.msra.mxu0 0.0
    %188 = vmatprep.subr.mxu0 0.0
    %189 = vmatpush2.msra.mxu0 0.0
    %190 = vmatprep.subr.mxu0 0.0
    %191 = vmatpush2.msra.mxu0 0.0
    %192 = vmatprep.subr.mxu0 0.0
    %193 = vmatpush2.msra.mxu0 0.0
    %194 = vmatprep.subr.mxu0 0.0
    %195 = vmatpush2.msra.mxu0 0.0
    %196 = vmatprep.subr.mxu0 0.0
    %197 = vmatpush2.msra.mxu0 0.0
    %198 = vmatprep.subr.mxu0 0.0
    %199 = vmatpush2.msra.mxu0 0.0
    %200 = vmatprep.subr.mxu0 0.0
    %201 = vmatpush2.msra.mxu0 0.0
    %202 = vmatprep.subr.mxu0 0.0
    %203 = vmatpush2.msra.mxu0 0.0
    %204 = vmatprep.subr.mxu0 0.0
    %205 = vmatpush2.msra.mxu0 0.0
    %206 = vmatprep.subr.mxu0 0.0
    %207 = vmatpush2.msra.mxu0 0.0
    %208 = vmatprep.subr.mxu0 0.0
    %209 = vmatpush2.msra.mxu0 0.0
    %210 = vmatprep.mubr.f32.mxu0 0.0
    %211 = vmatmul.mubr.f32.gmra.mxu0 %v135
    %v212 = vpop.f32.mrf.mxu0
    %v213 = vadd.f32 %v132, %v212
    %v214 = vpop.f32.mrf.mxu0
    %215 = vmatprep.mubr.f32.mxu0 0.0
    %216 = vmatmul.mubr.f32.gmra.mxu0 %v138
    %v217 = vpop.f32.mrf.mxu0
    %v218 = vadd.f32 %v132, %v217
    %v219 = vpop.f32.mrf.mxu0
    %220 = vmatprep.mubr.f32.mxu0 0.0
    %221 = vmatmul.mubr.f32.gmra.mxu0 %v141
    %v222 = vpop.f32.mrf.mxu0
    %v223 = vadd.f32 %v132, %v222
    %v224 = vpop.f32.mrf.mxu0
    %225 = vmatprep.mubr.f32.mxu0 0.0
    %226 = vmatmul.mubr.f32.gmra.mxu0 %v144
    %v227 = vpop.f32.mrf.mxu0
    %v228 = vadd.f32 %v132, %v227
    %v229 = vpop.f32.mrf.mxu0
    %230 = vdwg.mxu0
    %v231 = vld [vmem:[%s3] sm:$0xff]
    %v232 = vld [vmem:[%s3 + $0x8] sm:$0xff]
    %v233 = vld [vmem:[%s3 + $0x10] sm:$0xff]
    %v234 = vld [vmem:[%s3 + $0x18] sm:$0xff]
    %v235 = vlaneseq
    %v236 = vshrl.u32 %v235, 7
    %v237 = vsub.s32 0, %v236
    %v238 = vrot.slane %v118, %v237
    %vm239 = vcmask 261120
    %v241 = vsel %vm239, %v213, 0
    %v244 = vsel %vm239, %v218, 0
    %v247 = vsel %vm239, %v223, 0
    %v250 = vsel %vm239, %v228, 0
    %252 = vmatprep.subr.mxu0 0.0
    %253 = vmatpush1.msra.mxu0 0.0
    %254 = vmatprep.subr.mxu0 0.0
    %255 = vmatpush1.msra.mxu0 0.0
    %256 = vmatprep.subr.mxu0 0.0
    %257 = vmatpush1.msra.mxu0 0.0
    %258 = vmatprep.subr.mxu0 0.0
    %259 = vmatpush1.msra.mxu0 0.0
    %260 = vmatprep.subr.mxu0 0.0
    %261 = vmatpush1.msra.mxu0 0.0
    %262 = vmatprep.subr.mxu0 0.0
    %263 = vmatpush1.msra.mxu0 0.0
    %264 = vmatprep.subr.mxu0 0.0
    %265 = vmatpush1.msra.mxu0 0.0
    %266 = vmatprep.subr.mxu0 0.0
    %267 = vmatpush1.msra.mxu0 0.0
    %268 = vmatprep.subr.mxu0 0.0
    %269 = vmatpush1.msra.mxu0 0.0
    %270 = vmatprep.subr.mxu0 0.0
    %271 = vmatpush1.msra.mxu0 0.0
    %272 = vmatprep.subr.mxu0 0.0
    %273 = vmatpush1.msra.mxu0 0.0
    %274 = vmatprep.subr.mxu0 0.0
    %275 = vmatpush1.msra.mxu0 0.0
    %276 = vmatprep.subr.mxu0 0.0
    %277 = vmatpush1.msra.mxu0 %v234
    %278 = vmatprep.subr.mxu0 0.0
    %279 = vmatpush1.msra.mxu0 %v233
    %280 = vmatprep.subr.mxu0 0.0
    %281 = vmatpush1.msra.mxu0 %v232
    %282 = vmatprep.subr.mxu0 0.0
    %283 = vmatpush1.msra.mxu0 %v231
    %284 = vmatprep.subr.mxu0 0.0
    %285 = vmatpush2.msra.mxu0 0.0
    %286 = vmatprep.subr.mxu0 0.0
    %287 = vmatpush2.msra.mxu0 0.0
    %288 = vmatprep.subr.mxu0 0.0
    %289 = vmatpush2.msra.mxu0 0.0
    %290 = vmatprep.subr.mxu0 0.0
    %291 = vmatpush2.msra.mxu0 0.0
    %292 = vmatprep.subr.mxu0 0.0
    %293 = vmatpush2.msra.mxu0 0.0
    %294 = vmatprep.subr.mxu0 0.0
    %295 = vmatpush2.msra.mxu0 0.0
    %296 = vmatprep.subr.mxu0 0.0
    %297 = vmatpush2.msra.mxu0 0.0
    %298 = vmatprep.subr.mxu0 0.0
    %299 = vmatpush2.msra.mxu0 0.0
    %300 = vmatprep.subr.mxu0 0.0
    %301 = vmatpush2.msra.mxu0 0.0
    %302 = vmatprep.subr.mxu0 0.0
    %303 = vmatpush2.msra.mxu0 0.0
    %304 = vmatprep.subr.mxu0 0.0
    %305 = vmatpush2.msra.mxu0 0.0
    %306 = vmatprep.subr.mxu0 0.0
    %307 = vmatpush2.msra.mxu0 0.0
    %308 = vmatprep.subr.mxu0 0.0
    %309 = vmatpush2.msra.mxu0 0.0
    %310 = vmatprep.subr.mxu0 0.0
    %311 = vmatpush2.msra.mxu0 0.0
    %312 = vmatprep.subr.mxu0 0.0
    %313 = vmatpush2.msra.mxu0 0.0
    %314 = vmatprep.subr.mxu0 0.0
    %315 = vmatpush2.msra.mxu0 0.0
    %316 = vmatprep.mubr.f32.mxu0 0.0
    %317 = vmatmul.mubr.f32.gmra.mxu0 %v241
    %v318 = vpop.f32.mrf.mxu0
    %v319 = vadd.f32 %v238, %v318
    %v320 = vpop.f32.mrf.mxu0
    %321 = vmatprep.mubr.f32.mxu0 0.0
    %322 = vmatmul.mubr.f32.gmra.mxu0 %v244
    %v323 = vpop.f32.mrf.mxu0
    %v324 = vadd.f32 %v238, %v323
    %v325 = vpop.f32.mrf.mxu0
    %326 = vmatprep.mubr.f32.mxu0 0.0
    %327 = vmatmul.mubr.f32.gmra.mxu0 %v247
    %v328 = vpop.f32.mrf.mxu0
    %v329 = vadd.f32 %v238, %v328
    %v330 = vpop.f32.mrf.mxu0
    %331 = vmatprep.mubr.f32.mxu0 0.0
    %332 = vmatmul.mubr.f32.gmra.mxu0 %v250
    %v333 = vpop.f32.mrf.mxu0
    %v334 = vadd.f32 %v238, %v333
    %v335 = vpop.f32.mrf.mxu0
    %336 = vdwg.mxu0
    %v337 = vld [vmem:[%s4] sm:$0xff]
    %v338 = vld [vmem:[%s4 + $0x8] sm:$0xff]
    %v339 = vld [vmem:[%s4 + $0x10] sm:$0xff]
    %v340 = vld [vmem:[%s4 + $0x18] sm:$0xff]
    %v341 = vld [vmem:[#allocation7] sm:$0xff]
    %v342 = vld [vmem:[#allocation7 + $0x8] sm:$0xff]
    %v343 = vld [vmem:[#allocation7 + $0x10] sm:$0xff]
    %v344 = vld [vmem:[#allocation7 + $0x18] sm:$0xff]
    %v346 = vsel %vm239, %v329, 0
    %v349 = vsel %vm239, %v334, 0
    %351 = vmatprep.subr.mxu0 0.0
    %352 = vmatpush1.msra.mxu0 0.0
    %353 = vmatprep.subr.mxu0 0.0
    %354 = vmatpush1.msra.mxu0 0.0
    %355 = vmatprep.subr.mxu0 0.0
    %356 = vmatpush1.msra.mxu0 0.0
    %357 = vmatprep.subr.mxu0 0.0
    %358 = vmatpush1.msra.mxu0 0.0
    %359 = vmatprep.subr.mxu0 0.0
    %360 = vmatpush1.msra.mxu0 0.0
    %361 = vmatprep.subr.mxu0 0.0
    %362 = vmatpush1.msra.mxu0 0.0
    %363 = vmatprep.subr.mxu0 0.0
    %364 = vmatpush1.msra.mxu0 0.0
    %365 = vmatprep.subr.mxu0 0.0
    %366 = vmatpush1.msra.mxu0 0.0
    %367 = vmatprep.subr.mxu0 0.0
    %368 = vmatpush1.msra.mxu0 0.0
    %369 = vmatprep.subr.mxu0 0.0
    %370 = vmatpush1.msra.mxu0 0.0
    %371 = vmatprep.subr.mxu0 0.0
    %372 = vmatpush1.msra.mxu0 0.0
    %373 = vmatprep.subr.mxu0 0.0
    %374 = vmatpush1.msra.mxu0 0.0
    %375 = vmatprep.subr.mxu0 0.0
    %376 = vmatpush1.msra.mxu0 %v344
    %377 = vmatprep.subr.mxu0 0.0
    %378 = vmatpush1.msra.mxu0 %v343
    %379 = vmatprep.subr.mxu0 0.0
    %380 = vmatpush1.msra.mxu0 %v342
    %381 = vmatprep.subr.mxu0 0.0
    %382 = vmatpush1.msra.mxu0 %v341
    %383 = vmatprep.subr.mxu0 0.0
    %384 = vmatpush2.msra.mxu0 0.0
    %385 = vmatprep.subr.mxu0 0.0
    %386 = vmatpush2.msra.mxu0 0.0
    %387 = vmatprep.subr.mxu0 0.0
    %388 = vmatpush2.msra.mxu0 0.0
    %389 = vmatprep.subr.mxu0 0.0
    %390 = vmatpush2.msra.mxu0 0.0
    %391 = vmatprep.subr.mxu0 0.0
    %392 = vmatpush2.msra.mxu0 0.0
    %393 = vmatprep.subr.mxu0 0.0
    %394 = vmatpush2.msra.mxu0 0.0
    %395 = vmatprep.subr.mxu0 0.0
    %396 = vmatpush2.msra.mxu0 0.0
    %397 = vmatprep.subr.mxu0 0.0
    %398 = vmatpush2.msra.mxu0 0.0
    %399 = vmatprep.subr.mxu0 0.0
    %400 = vmatpush2.msra.mxu0 0.0
    %401 = vmatprep.subr.mxu0 0.0
    %402 = vmatpush2.msra.mxu0 0.0
    %403 = vmatprep.subr.mxu0 0.0
    %404 = vmatpush2.msra.mxu0 0.0
    %405 = vmatprep.subr.mxu0 0.0
    %406 = vmatpush2.msra.mxu0 0.0
    %407 = vmatprep.subr.mxu0 0.0
    %408 = vmatpush2.msra.mxu0 0.0
    %409 = vmatprep.subr.mxu0 0.0
    %410 = vmatpush2.msra.mxu0 0.0
    %411 = vmatprep.subr.mxu0 0.0
    %412 = vmatpush2.msra.mxu0 0.0
    %413 = vmatprep.subr.mxu0 0.0
    %414 = vmatpush2.msra.mxu0 0.0
    %415 = vmatprep.mubr.f32.mxu0 0.0
    %416 = vmatmul.mubr.f32.gmra.mxu0 %v346
    %v417 = vpop.f32.mrf.mxu0
    %v418 = vadd.f32 0.0, %v417
    %v419 = vpop.f32.mrf.mxu0
    %420 = vmatprep.mubr.f32.mxu0 0.0
    %421 = vmatmul.mubr.f32.gmra.mxu0 %v349
    %v422 = vpop.f32.mrf.mxu0
    %v423 = vadd.f32 0.0, %v422
    %v424 = vpop.f32.mrf.mxu0
    %425 = vdwg.mxu0
    %v427 = vsel %vm239, %v319, 0
    %v430 = vsel %vm239, %v324, 0
    %432 = vmatprep.subr.mxu0 0.0
    %433 = vmatpush1.msra.mxu0 0.0
    %434 = vmatprep.subr.mxu0 0.0
    %435 = vmatpush1.msra.mxu0 0.0
    %436 = vmatprep.subr.mxu0 0.0
    %437 = vmatpush1.msra.mxu0 0.0
    %438 = vmatprep.subr.mxu0 0.0
    %439 = vmatpush1.msra.mxu0 0.0
    %440 = vmatprep.subr.mxu0 0.0
    %441 = vmatpush1.msra.mxu0 0.0
    %442 = vmatprep.subr.mxu0 0.0
    %443 = vmatpush1.msra.mxu0 0.0
    %444 = vmatprep.subr.mxu0 0.0
    %445 = vmatpush1.msra.mxu0 0.0
    %446 = vmatprep.subr.mxu0 0.0
    %447 = vmatpush1.msra.mxu0 0.0
    %448 = vmatprep.subr.mxu0 0.0
    %449 = vmatpush1.msra.mxu0 0.0
    %450 = vmatprep.subr.mxu0 0.0
    %451 = vmatpush1.msra.mxu0 0.0
    %452 = vmatprep.subr.mxu0 0.0
    %453 = vmatpush1.msra.mxu0 0.0
    %454 = vmatprep.subr.mxu0 0.0
    %455 = vmatpush1.msra.mxu0 0.0
    %456 = vmatprep.subr.mxu0 0.0
    %457 = vmatpush1.msra.mxu0 %v340
    %458 = vmatprep.subr.mxu0 0.0
    %459 = vmatpush1.msra.mxu0 %v339
    %460 = vmatprep.subr.mxu0 0.0
    %461 = vmatpush1.msra.mxu0 %v338
    %462 = vmatprep.subr.mxu0 0.0
    %463 = vmatpush1.msra.mxu0 %v337
    %464 = vmatprep.subr.mxu0 0.0
    %465 = vmatpush2.msra.mxu0 0.0
    %466 = vmatprep.subr.mxu0 0.0
    %467 = vmatpush2.msra.mxu0 0.0
    %468 = vmatprep.subr.mxu0 0.0
    %469 = vmatpush2.msra.mxu0 0.0
    %470 = vmatprep.subr.mxu0 0.0
    %471 = vmatpush2.msra.mxu0 0.0
    %472 = vmatprep.subr.mxu0 0.0
    %473 = vmatpush2.msra.mxu0 0.0
    %474 = vmatprep.subr.mxu0 0.0
    %475 = vmatpush2.msra.mxu0 0.0
    %476 = vmatprep.subr.mxu0 0.0
    %477 = vmatpush2.msra.mxu0 0.0
    %478 = vmatprep.subr.mxu0 0.0
    %479 = vmatpush2.msra.mxu0 0.0
    %480 = vmatprep.subr.mxu0 0.0
    %481 = vmatpush2.msra.mxu0 0.0
    %482 = vmatprep.subr.mxu0 0.0
    %483 = vmatpush2.msra.mxu0 0.0
    %484 = vmatprep.subr.mxu0 0.0
    %485 = vmatpush2.msra.mxu0 0.0
    %486 = vmatprep.subr.mxu0 0.0
    %487 = vmatpush2.msra.mxu0 0.0
    %488 = vmatprep.subr.mxu0 0.0
    %489 = vmatpush2.msra.mxu0 0.0
    %490 = vmatprep.subr.mxu0 0.0
    %491 = vmatpush2.msra.mxu0 0.0
    %492 = vmatprep.subr.mxu0 0.0
    %493 = vmatpush2.msra.mxu0 0.0
    %494 = vmatprep.subr.mxu0 0.0
    %495 = vmatpush2.msra.mxu0 0.0
    %496 = vmatprep.mubr.f32.mxu0 0.0
    %497 = vmatmul.mubr.f32.gmra.mxu0 %v427
    %v498 = vpop.f32.mrf.mxu0
    %v499 = vadd.f32 %v418, %v498
    %v500 = vpop.f32.mrf.mxu0
    %501 = vmatprep.mubr.f32.mxu0 0.0
    %502 = vmatmul.mubr.f32.gmra.mxu0 %v430
    %v503 = vpop.f32.mrf.mxu0
    %v504 = vadd.f32 %v423, %v503
    %v505 = vpop.f32.mrf.mxu0
    %506 = vdwg.mxu0
    %v507 = vlaneseq
    %v508 = vshrl.u32 %v507, 7
    %v509 = vsub.s32 0, %v508
    %v510 = vrot.slane %v119, %v509
    %v511 = vadd.f32 %v499, %v510
    %v512 = vadd.f32 %v504, %v510
    %v513 = vld [vmem:[#allocation9] sm:$0xff]
    %v514 = vld [vmem:[#allocation9 + $0x8] sm:$0xff]
    %v515 = vld [vmem:[#allocation9 + $0x10] sm:$0xff]
    %v516 = vld [vmem:[#allocation9 + $0x18] sm:$0xff]
    %v517 = vlaneseq
    %v518 = vshrl.u32 %v517, 7
    %v519 = vsub.s32 0, %v518
    %v520 = vrot.slane %v120, %v519
    %v522 = vsel %vm239, %v511, 0
    %v525 = vsel %vm239, %v512, 0
    %527 = vmatprep.subr.mxu0 0.0
    %528 = vmatpush1.msra.mxu0 0.0
    %529 = vmatprep.subr.mxu0 0.0
    %530 = vmatpush1.msra.mxu0 0.0
    %531 = vmatprep.subr.mxu0 0.0
    %532 = vmatpush1.msra.mxu0 0.0
    %533 = vmatprep.subr.mxu0 0.0
    %534 = vmatpush1.msra.mxu0 0.0
    %535 = vmatprep.subr.mxu0 0.0
    %536 = vmatpush1.msra.mxu0 0.0
    %537 = vmatprep.subr.mxu0 0.0
    %538 = vmatpush1.msra.mxu0 0.0
    %539 = vmatprep.subr.mxu0 0.0
    %540 = vmatpush1.msra.mxu0 0.0
    %541 = vmatprep.subr.mxu0 0.0
    %542 = vmatpush1.msra.mxu0 0.0
    %543 = vmatprep.subr.mxu0 0.0
    %544 = vmatpush1.msra.mxu0 0.0
    %545 = vmatprep.subr.mxu0 0.0
    %546 = vmatpush1.msra.mxu0 0.0
    %547 = vmatprep.subr.mxu0 0.0
    %548 = vmatpush1.msra.mxu0 0.0
    %549 = vmatprep.subr.mxu0 0.0
    %550 = vmatpush1.msra.mxu0 0.0
    %551 = vmatprep.subr.mxu0 0.0
    %552 = vmatpush1.msra.mxu0 %v516
    %553 = vmatprep.subr.mxu0 0.0
    %554 = vmatpush1.msra.mxu0 %v515
    %555 = vmatprep.subr.mxu0 0.0
    %556 = vmatpush1.msra.mxu0 %v514
    %557 = vmatprep.subr.mxu0 0.0
    %558 = vmatpush1.msra.mxu0 %v513
    %559 = vmatprep.subr.mxu0 0.0
    %560 = vmatpush2.msra.mxu0 0.0
    %561 = vmatprep.subr.mxu0 0.0
    %562 = vmatpush2.msra.mxu0 0.0
    %563 = vmatprep.subr.mxu0 0.0
    %564 = vmatpush2.msra.mxu0 0.0
    %565 = vmatprep.subr.mxu0 0.0
    %566 = vmatpush2.msra.mxu0 0.0
    %567 = vmatprep.subr.mxu0 0.0
    %568 = vmatpush2.msra.mxu0 0.0
    %569 = vmatprep.subr.mxu0 0.0
    %570 = vmatpush2.msra.mxu0 0.0
    %571 = vmatprep.subr.mxu0 0.0
    %572 = vmatpush2.msra.mxu0 0.0
    %573 = vmatprep.subr.mxu0 0.0
    %574 = vmatpush2.msra.mxu0 0.0
    %575 = vmatprep.subr.mxu0 0.0
    %576 = vmatpush2.msra.mxu0 0.0
    %577 = vmatprep.subr.mxu0 0.0
    %578 = vmatpush2.msra.mxu0 0.0
    %579 = vmatprep.subr.mxu0 0.0
    %580 = vmatpush2.msra.mxu0 0.0
    %581 = vmatprep.subr.mxu0 0.0
    %582 = vmatpush2.msra.mxu0 0.0
    %583 = vmatprep.subr.mxu0 0.0
    %584 = vmatpush2.msra.mxu0 0.0
    %585 = vmatprep.subr.mxu0 0.0
    %586 = vmatpush2.msra.mxu0 0.0
    %587 = vmatprep.subr.mxu0 0.0
    %588 = vmatpush2.msra.mxu0 0.0
    %589 = vmatprep.subr.mxu0 0.0
    %590 = vmatpush2.msra.mxu0 0.0
    %591 = vmatprep.mubr.f32.mxu0 0.0
    %592 = vmatmul.mubr.f32.gmra.mxu0 %v522
    %v593 = vpop.f32.mrf.mxu0
    %v594 = vadd.f32 %v520, %v593
    %v595 = vpop.f32.mrf.mxu0
    %596 = vmatprep.mubr.f32.mxu0 0.0
    %597 = vmatmul.mubr.f32.gmra.mxu0 %v525
    %v598 = vpop.f32.mrf.mxu0
    %v599 = vadd.f32 %v520, %v598
    %v600 = vpop.f32.mrf.mxu0
    %601 = vdwg.mxu0
    %v602 = vld [vmem:[#allocation10] sm:$0xff]
    %v603 = vld [vmem:[#allocation10 + $0x8] sm:$0xff]
    %v604 = vld [vmem:[#allocation10 + $0x10] sm:$0xff]
    %v605 = vld [vmem:[#allocation10 + $0x18] sm:$0xff]
    %v606 = vlaneseq
    %v607 = vshrl.u32 %v606, 7
    %v608 = vsub.s32 0, %v607
    %v609 = vrot.slane %v121, %v608
    %v611 = vsel %vm239, %v594, 0
    %v614 = vsel %vm239, %v599, 0
    %616 = vmatprep.subr.mxu0 0.0
    %617 = vmatpush1.msra.mxu0 0.0
    %618 = vmatprep.subr.mxu0 0.0
    %619 = vmatpush1.msra.mxu0 0.0
    %620 = vmatprep.subr.mxu0 0.0
    %621 = vmatpush1.msra.mxu0 0.0
    %622 = vmatprep.subr.mxu0 0.0
    %623 = vmatpush1.msra.mxu0 0.0
    %624 = vmatprep.subr.mxu0 0.0
    %625 = vmatpush1.msra.mxu0 0.0
    %626 = vmatprep.subr.mxu0 0.0
    %627 = vmatpush1.msra.mxu0 0.0
    %628 = vmatprep.subr.mxu0 0.0
    %629 = vmatpush1.msra.mxu0 0.0
    %630 = vmatprep.subr.mxu0 0.0
    %631 = vmatpush1.msra.mxu0 0.0
    %632 = vmatprep.subr.mxu0 0.0
    %633 = vmatpush1.msra.mxu0 0.0
    %634 = vmatprep.subr.mxu0 0.0
    %635 = vmatpush1.msra.mxu0 0.0
    %636 = vmatprep.subr.mxu0 0.0
    %637 = vmatpush1.msra.mxu0 0.0
    %638 = vmatprep.subr.mxu0 0.0
    %639 = vmatpush1.msra.mxu0 0.0
    %640 = vmatprep.subr.mxu0 0.0
    %641 = vmatpush1.msra.mxu0 %v605
    %642 = vmatprep.subr.mxu0 0.0
    %643 = vmatpush1.msra.mxu0 %v604
    %644 = vmatprep.subr.mxu0 0.0
    %645 = vmatpush1.msra.mxu0 %v603
    %646 = vmatprep.subr.mxu0 0.0
    %647 = vmatpush1.msra.mxu0 %v602
    %648 = vmatprep.subr.mxu0 0.0
    %649 = vmatpush2.msra.mxu0 0.0
    %650 = vmatprep.subr.mxu0 0.0
    %651 = vmatpush2.msra.mxu0 0.0
    %652 = vmatprep.subr.mxu0 0.0
    %653 = vmatpush2.msra.mxu0 0.0
    %654 = vmatprep.subr.mxu0 0.0
    %655 = vmatpush2.msra.mxu0 0.0
    %656 = vmatprep.subr.mxu0 0.0
    %657 = vmatpush2.msra.mxu0 0.0
    %658 = vmatprep.subr.mxu0 0.0
    %659 = vmatpush2.msra.mxu0 0.0
    %660 = vmatprep.subr.mxu0 0.0
    %661 = vmatpush2.msra.mxu0 0.0
    %662 = vmatprep.subr.mxu0 0.0
    %663 = vmatpush2.msra.mxu0 0.0
    %664 = vmatprep.subr.mxu0 0.0
    %665 = vmatpush2.msra.mxu0 0.0
    %666 = vmatprep.subr.mxu0 0.0
    %667 = vmatpush2.msra.mxu0 0.0
    %668 = vmatprep.subr.mxu0 0.0
    %669 = vmatpush2.msra.mxu0 0.0
    %670 = vmatprep.subr.mxu0 0.0
    %671 = vmatpush2.msra.mxu0 0.0
    %672 = vmatprep.subr.mxu0 0.0
    %673 = vmatpush2.msra.mxu0 0.0
    %674 = vmatprep.subr.mxu0 0.0
    %675 = vmatpush2.msra.mxu0 0.0
    %676 = vmatprep.subr.mxu0 0.0
    %677 = vmatpush2.msra.mxu0 0.0
    %678 = vmatprep.subr.mxu0 0.0
    %679 = vmatpush2.msra.mxu0 0.0
    %680 = vmatprep.mubr.f32.mxu0 0.0
    %681 = vmatmul.mubr.f32.gmra.mxu0 %v611
    %v682 = vpop.f32.mrf.mxu0
    %v683 = vadd.f32 %v609, %v682
    %v684 = vpop.f32.mrf.mxu0
    %685 = vmatprep.mubr.f32.mxu0 0.0
    %686 = vmatmul.mubr.f32.gmra.mxu0 %v614
    %v687 = vpop.f32.mrf.mxu0
    %v688 = vadd.f32 %v609, %v687
    %v689 = vpop.f32.mrf.mxu0
    %690 = vdwg.mxu0
    %v691 = vld [vmem:[%s8] sm:$0xff]
    %v692 = vld [vmem:[%s8 + $0x8] sm:$0xff]
    %v693 = vld [vmem:[%s8 + $0x10] sm:$0xff]
    %v694 = vld [vmem:[%s8 + $0x18] sm:$0xff]
    %v695 = vld [vmem:[%s8 + $0x20] sm:$0xff]
    %v696 = vld [vmem:[%s8 + $0x28] sm:$0xff]
    %v697 = vld [vmem:[%s8 + $0x30] sm:$0xff]
    %v698 = vld [vmem:[%s8 + $0x38] sm:$0xff]
    %v699 = vlaneseq
    %v700 = vshrl.u32 %v699, 7
    %v701 = vsub.s32 0, %v700
    %v702 = vrot.slane %v122, %v701
    %vm703 = vcmask 523264
    %v705 = vsel %vm703, %v683, 0
    %v708 = vsel %vm703, %v688, 0
    %710 = vmatprep.subr.mxu0 0.0
    %711 = vmatpush1.msra.mxu0 0.0
    %712 = vmatprep.subr.mxu0 0.0
    %713 = vmatpush1.msra.mxu0 0.0
    %714 = vmatprep.subr.mxu0 0.0
    %715 = vmatpush1.msra.mxu0 0.0
    %716 = vmatprep.subr.mxu0 0.0
    %717 = vmatpush1.msra.mxu0 0.0
    %718 = vmatprep.subr.mxu0 0.0
    %719 = vmatpush1.msra.mxu0 0.0
    %720 = vmatprep.subr.mxu0 0.0
    %721 = vmatpush1.msra.mxu0 0.0
    %722 = vmatprep.subr.mxu0 0.0
    %723 = vmatpush1.msra.mxu0 0.0
    %724 = vmatprep.subr.mxu0 0.0
    %725 = vmatpush1.msra.mxu0 0.0
    %726 = vmatprep.subr.mxu0 0.0
    %727 = vmatpush1.msra.mxu0 %v698
    %728 = vmatprep.subr.mxu0 0.0
    %729 = vmatpush1.msra.mxu0 %v697
    %730 = vmatprep.subr.mxu0 0.0
    %731 = vmatpush1.msra.mxu0 %v696
    %732 = vmatprep.subr.mxu0 0.0
    %733 = vmatpush1.msra.mxu0 %v695
    %734 = vmatprep.subr.mxu0 0.0
    %735 = vmatpush1.msra.mxu0 %v694
    %736 = vmatprep.subr.mxu0 0.0
    %737 = vmatpush1.msra.mxu0 %v693
    %738 = vmatprep.subr.mxu0 0.0
    %739 = vmatpush1.msra.mxu0 %v692
    %740 = vmatprep.subr.mxu0 0.0
    %741 = vmatpush1.msra.mxu0 %v691
    %742 = vmatprep.subr.mxu0 0.0
    %743 = vmatpush2.msra.mxu0 0.0
    %744 = vmatprep.subr.mxu0 0.0
    %745 = vmatpush2.msra.mxu0 0.0
    %746 = vmatprep.subr.mxu0 0.0
    %747 = vmatpush2.msra.mxu0 0.0
    %748 = vmatprep.subr.mxu0 0.0
    %749 = vmatpush2.msra.mxu0 0.0
    %750 = vmatprep.subr.mxu0 0.0
    %751 = vmatpush2.msra.mxu0 0.0
    %752 = vmatprep.subr.mxu0 0.0
    %753 = vmatpush2.msra.mxu0 0.0
    %754 = vmatprep.subr.mxu0 0.0
    %755 = vmatpush2.msra.mxu0 0.0
    %756 = vmatprep.subr.mxu0 0.0
    %757 = vmatpush2.msra.mxu0 0.0
    %758 = vmatprep.subr.mxu0 0.0
    %759 = vmatpush2.msra.mxu0 0.0
    %760 = vmatprep.subr.mxu0 0.0
    %761 = vmatpush2.msra.mxu0 0.0
    %762 = vmatprep.subr.mxu0 0.0
    %763 = vmatpush2.msra.mxu0 0.0
    %764 = vmatprep.subr.mxu0 0.0
    %765 = vmatpush2.msra.mxu0 0.0
    %766 = vmatprep.subr.mxu0 0.0
    %767 = vmatpush2.msra.mxu0 0.0
    %768 = vmatprep.subr.mxu0 0.0
    %769 = vmatpush2.msra.mxu0 0.0
    %770 = vmatprep.subr.mxu0 0.0
    %771 = vmatpush2.msra.mxu0 0.0
    %772 = vmatprep.subr.mxu0 0.0
    %773 = vmatpush2.msra.mxu0 0.0
    %774 = vmatprep.mubr.f32.mxu0 0.0
    %775 = vmatmul.mubr.f32.gmra.mxu0 %v705
    %v776 = vpop.f32.mrf.mxu0
    %v777 = vadd.f32 %v702, %v776
    %v778 = vpop.f32.mrf.mxu0
    %779 = vmatprep.mubr.f32.mxu0 0.0
    %780 = vmatmul.mubr.f32.gmra.mxu0 %v708
    %v781 = vpop.f32.mrf.mxu0
    %v782 = vadd.f32 %v702, %v781
    %v783 = vpop.f32.mrf.mxu0
    %784 = vdwg.mxu0
    %vm785 = vcmask 15360
    %786 = vst.msk [vmem:[%s10] sm:$0xff] %vm785, %v777
    %787 = vst.msk [vmem:[%s10 + $0x8] sm:$0xff] %vm785, %v782
    // Predicated region
    $region66: #{tpu_custom_call.1} parent=1 // pred_check
      _
    $region67: #{tpu_custom_call.1} parent=1 // pred_check_branch
      %789 = sbr.rel (0) target = $region69
    $region68: #{tpu_custom_call.1} parent=1 // pred_region
      _
    $region69: #{tpu_custom_call.1} parent=1 // pred_fallthru
      _
    // Predicated region
    $region70: #{tpu_custom_call.1} parent=1 // pred_check
      _
    $region71: #{tpu_custom_call.1} parent=1 // pred_check_branch
      %791 = sbr.rel (0) target = $region73
    $region72: #{tpu_custom_call.1} parent=1 // pred_region
      _
    $region73: #{tpu_custom_call.1} parent=1 // pred_fallthru
      _
    %792 = vsyncpa [#allocation3], 1
    %793 = vsyncpa [#allocation5], 1
    %794 = vsyncpa [#allocation8], 1
    %795 = vsyncpa [#allocation11], 1

// kernel: tpu_custom_call.1
$region0: #{tpu_custom_call.1}
  #allocation0 [shape = 'u32[]', space=smem, size = 0x4, offset = 0x4, fixed_abs, tag = 'smem constant byte address 0x4 - core index']
  #allocation1 [shape = 'u32[144,128]{1,0:T(1,128)}', space=vmem, size = 0x12000, scoped, tag = 'internal scratch']
  %s0 = inlined_call_operand.hbm [shape: f32[16,16], index: 0, kind: input, shape index: {}]
  %s1 = inlined_call_operand.hbm [shape: f32[16,16], index: 1, kind: input, shape index: {}]
  %s2 = inlined_call_operand.hbm [shape: f32[16,32], index: 2, kind: input, shape index: {}]
  %s3 = inlined_call_operand.vmem [shape: f32[32,32], index: 3, kind: input, shape index: {}]
  %s4 = inlined_call_operand.vmem [shape: f32[32,32], index: 4, kind: input, shape index: {}]
  %s5 = inlined_call_operand.hbm [shape: f32[32,32], index: 5, kind: input, shape index: {}]
  %s6 = inlined_call_operand.hbm [shape: f32[32,32], index: 6, kind: input, shape index: {}]
  %s7 = inlined_call_operand.hbm [shape: f32[32,64], index: 7, kind: input, shape index: {}]
  %s8 = inlined_call_operand.vmem [shape: f32[64,2], index: 8, kind: input, shape index: {}]
  %s9 = inlined_call_operand.vmem [shape: f32[6,64], index: 9, kind: input, shape index: {}]
  %s10 = inlined_call_operand.vmem [shape: f32[16,2], index: 10, kind: output, shape index: {}]
  %s11 = sld [smem:[#allocation0]]
  $region74: #{tpu_custom_call.1} parent=0
    _
  %s13 = ssub.s32 1, %s11
  %s14 = scalar_select 0, %s13, %s11
  $region1: #{tpu_custom_call.1} parent=0
    #allocation2 [shape = 'u8[8192]{0}', space=vmem, size = 0x2000, scoped, tag = 'input window, operand 0, single buffered']
    #allocation3 [shape = 's32[1]{0}', space=sflag, size = 0x4, scoped, tag = 'scoped memory for tpu_custom_call.1']
    #allocation4 [shape = 'u8[8192]{0}', space=vmem, size = 0x2000, scoped, tag = 'input window, operand 1, single buffered']
    #allocation5 [shape = 's32[1]{0}', space=sflag, size = 0x4, scoped, tag = 'scoped memory for tpu_custom_call.1']
    #allocation6 [shape = 'u8[8192]{0}', space=vmem, size = 0x2000, scoped, tag = 'input window, operand 2, single buffered']
    #allocation7 [shape = 'u8[16384]{0}', space=vmem, size = 0x4000, scoped, tag = 'input window, operand 5, single buffered']
    #allocation8 [shape = 's32[1]{0}', space=sflag, size = 0x4, scoped, tag = 'scoped memory for tpu_custom_call.1']
    #allocation9 [shape = 'u8[16384]{0}', space=vmem, size = 0x4000, scoped, tag = 'input window, operand 6, single buffered']
    #allocation10 [shape = 'u8[16384]{0}', space=vmem, size = 0x4000, scoped, tag = 'input window, operand 7, single buffered']
    #allocation11 [shape = 's32[1]{0}', space=sflag, size = 0x4, scoped, tag = 'scoped memory for tpu_custom_call.1']
    %15 = vsyncpa [#allocation3], 0
    %16 = vsyncpa [#allocation5], 0
    %17 = vsyncpa [#allocation8], 0
    %18 = vsyncpa [#allocation11], 0
    // Predicated region
    $region2: #{tpu_custom_call.1} parent=1 // pred_check
      _
    $region3: #{tpu_custom_call.1} parent=1 // pred_check_branch
      %20 = sbr.rel (0) target = $region5
    $region4: #{tpu_custom_call.1} parent=1 // pred_region
      %s22 = ssub.s32 256, 256
      %23 = vsyncadd [#allocation3], %s22
      %s24 = sshll.u32 [#allocation2], 4
      %s25 = int_to_ptr.vmem [resolvable:$true] %s24
      %30 = dma.hbm_to_vmem [thread:$0]  %s0, 256, %s25, [#allocation3], 128, 128, 8
    $region5: #{tpu_custom_call.1} parent=1 // pred_fallthru
      _
    // Predicated region
    $region6: #{tpu_custom_call.1} parent=1 // pred_check
      _
    $region7: #{tpu_custom_call.1} parent=1 // pred_check_branch
      %32 = sbr.rel (0) target = $region9
    $region8: #{tpu_custom_call.1} parent=1 // pred_region
      %s34 = ssub.s32 256, 256
      %35 = vsyncadd [#allocation5], %s34
      %s36 = sshll.u32 [#allocation4], 4
      %s37 = int_to_ptr.vmem [resolvable:$true] %s36
      %42 = dma.hbm_to_vmem [thread:$0]  %s1, 256, %s37, [#allocation5], 128, 128, 8
    $region9: #{tpu_custom_call.1} parent=1 // pred_fallthru
      _
    // Predicated region
    $region10: #{tpu_custom_call.1} parent=1 // pred_check
      _
    $region11: #{tpu_custom_call.1} parent=1 // pred_check_branch
      %44 = sbr.rel (0) target = $region13
    $region12: #{tpu_custom_call.1} parent=1 // pred_region
      %s46 = ssub.s32 256, 256
      %47 = vsyncadd [#allocation5], %s46
      %s48 = sshll.u32 [#allocation6], 4
      %s49 = int_to_ptr.vmem [resolvable:$true] %s48
      %54 = dma.hbm_to_vmem [thread:$0]  %s2, 256, %s49, [#allocation5], 128, 128, 8
    $region13: #{tpu_custom_call.1} parent=1 // pred_fallthru
      _
    // Predicated region
    $region14: #{tpu_custom_call.1} parent=1 // pred_check
      _
    $region15: #{tpu_custom_call.1} parent=1 // pred_check_branch
      %56 = sbr.rel (0) target = $region17
    $region16: #{tpu_custom_call.1} parent=1 // pred_region
      _
    $region17: #{tpu_custom_call.1} parent=1 // pred_fallthru
      _
    // Predicated region
    $region18: #{tpu_custom_call.1} parent=1 // pred_check
      _
    $region19: #{tpu_custom_call.1} parent=1 // pred_check_branch
      %58 = sbr.rel (0) target = $region21
    $region20: #{tpu_custom_call.1} parent=1 // pred_region
      _
    $region21: #{tpu_custom_call.1} parent=1 // pred_fallthru
      _
    // Predicated region
    $region22: #{tpu_custom_call.1} parent=1 // pred_check
      _
    $region23: #{tpu_custom_call.1} parent=1 // pred_check_branch
      %60 = sbr.rel (0) target = $region25
    $region24: #{tpu_custom_call.1} parent=1 // pred_region
      %s62 = ssub.s32 512, 512
      %63 = vsyncadd [#allocation8], %s62
      %s64 = sshll.u32 [#allocation7], 4
      %s65 = int_to_ptr.vmem [resolvable:$true] %s64
      %70 = dma.hbm_to_vmem [thread:$0]  %s5, 512, %s65, [#allocation8], 128, 128, 8
    $region25: #{tpu_custom_call.1} parent=1 // pred_fallthru
      _
    // Predicated region
    $region26: #{tpu_custom_call.1} parent=1 // pred_check
      _
    $region27: #{tpu_custom_call.1} parent=1 // pred_check_branch
      %72 = sbr.rel (0) target = $region29
    $region28: #{tpu_custom_call.1} parent=1 // pred_region
      %s74 = ssub.s32 512, 512
      %75 = vsyncadd [#allocation8], %s74
      %s76 = sshll.u32 [#allocation9], 4
      %s77 = int_to_ptr.vmem [resolvable:$true] %s76
      %82 = dma.hbm_to_vmem [thread:$0]  %s6, 512, %s77, [#allocation8], 128, 128, 8
    $region29: #{tpu_custom_call.1} parent=1 // pred_fallthru
      _
    // Predicated region
    $region30: #{tpu_custom_call.1} parent=1 // pred_check
      _
    $region31: #{tpu_custom_call.1} parent=1 // pred_check_branch
      %84 = sbr.rel (0) target = $region33
    $region32: #{tpu_custom_call.1} parent=1 // pred_region
      %s86 = ssub.s32 512, 512
      %87 = vsyncadd [#allocation11], %s86
      %s88 = sshll.u32 [#allocation10], 4
      %s89 = int_to_ptr.vmem [resolvable:$true] %s88
      %94 = dma.hbm_to_vmem [thread:$0]  %s7, 512, %s89, [#allocation11], 128, 128, 8
    $region33: #{tpu_custom_call.1} parent=1 // pred_fallthru
      _
    // Predicated region
    $region34: #{tpu_custom_call.1} parent=1 // pred_check
      _
    $region35: #{tpu_custom_call.1} parent=1 // pred_check_branch
      %96 = sbr.rel (0) target = $region37
    $region36: #{tpu_custom_call.1} parent=1 // pred_region
      _
    $region37: #{tpu_custom_call.1} parent=1 // pred_fallthru
      _
    // Predicated region
    $region38: #{tpu_custom_call.1} parent=1 // pred_check
      _
    $region39: #{tpu_custom_call.1} parent=1 // pred_check_branch
      %98 = sbr.rel (0) target = $region41
    $region40: #{tpu_custom_call.1} parent=1 // pred_region
      _
    $region41: #{tpu_custom_call.1} parent=1 // pred_fallthru
      _
    // Predicated region
    $region42: #{tpu_custom_call.1} parent=1 // pred_check
      _
    $region43: #{tpu_custom_call.1} parent=1 // pred_check_branch
      %100 = sbr.rel (0) target = $region45
    $region44: #{tpu_custom_call.1} parent=1 // pred_region
      %101 = dma.done [#allocation3], 256
    $region45: #{tpu_custom_call.1} parent=1 // pred_fallthru
      _
    // Predicated region
    $region46: #{tpu_custom_call.1} parent=1 // pred_check
      _
    $region47: #{tpu_custom_call.1} parent=1 // pred_check_branch
      %103 = sbr.rel (0) target = $region49
    $region48: #{tpu_custom_call.1} parent=1 // pred_region
      %104 = dma.done [#allocation5], 256
    $region49: #{tpu_custom_call.1} parent=1 // pred_fallthru
      _
    // Predicated region
    $region50: #{tpu_custom_call.1} parent=1 // pred_check
      _
    $region51: #{tpu_custom_call.1} parent=1 // pred_check_branch
      %106 = sbr.rel (0) target = $region53
    $region52: #{tpu_custom_call.1} parent=1 // pred_region
      %107 = dma.done [#allocation5], 256
    $region53: #{tpu_custom_call.1} parent=1 // pred_fallthru
      _
    // Predicated region
    $region54: #{tpu_custom_call.1} parent=1 // pred_check
      _
    $region55: #{tpu_custom_call.1} parent=1 // pred_check_branch
      %109 = sbr.rel (0) target = $region57
    $region56: #{tpu_custom_call.1} parent=1 // pred_region
      %110 = dma.done [#allocation8], 512
    $region57: #{tpu_custom_call.1} parent=1 // pred_fallthru
      _
    // Predicated region
    $region58: #{tpu_custom_call.1} parent=1 // pred_check
      _
    $region59: #{tpu_custom_call.1} parent=1 // pred_check_branch
      %112 = sbr.rel (0) target = $region61
    $region60: #{tpu_custom_call.1} parent=1 // pred_region
      %113 = dma.done [#allocation8], 512
    $region61: #{tpu_custom_call.1} parent=1 // pred_fallthru
      _
    // Predicated region
    $region62: #{tpu_custom_call.1} parent=1 // pred_check
      _
    $region63: #{tpu_custom_call.1} parent=1 // pred_check_branch
      %115 = sbr.rel (0) target = $region65
    $region64: #{tpu_custom_call.1} parent=1 // pred_region
      %116 = dma.done [#allocation11], 512
    $region65: #{tpu_custom_call.1} parent=1 // pred_fallthru
      _
    %v117 = vld [vmem:[%s9] sm:$0x1]
    %v118 = vld [vmem:[%s9 + $0x1] sm:$0x1]
    %v119 = vld [vmem:[%s9 + $0x2] sm:$0x1]
    %v120 = vld [vmem:[%s9 + $0x3] sm:$0x1]
    %v121 = vld [vmem:[%s9 + $0x4] sm:$0x1]
    %v122 = vld [vmem:[%s9 + $0x5] sm:$0x1]
    %v123 = vld [vmem:[#allocation2] sm:$0xff]
    %v124 = vld [vmem:[#allocation2 + $0x8] sm:$0xff]
    %v125 = vld [vmem:[#allocation4] sm:$0xff]
    %v126 = vld [vmem:[#allocation4 + $0x8] sm:$0xff]
    %v127 = vld [vmem:[#allocation6] sm:$0xff]
    %v128 = vld [vmem:[#allocation6 + $0x8] sm:$0xff]
    %v129 = vlaneseq
    %v130 = vshrl.u32 %v129, 7
    %v131 = vsub.s32 0, %v130
    %v132 = vrot.slane %v117, %v131
    %vm133 = vcmask 130048
    %v135 = vsel %vm133, %v123, 0
    %v138 = vsel %vm133, %v124, 0
    %v141 = vsel %vm133, %v125, 0
    %v144 = vsel %vm133, %v126, 0
    %146 = vmatprep.subr.mxu0 0.0
    %147 = vmatpush1.msra.mxu0 0.0
    %148 = vmatprep.subr.mxu0 0.0
    %149 = vmatpush1.msra.mxu0 0.0
    %150 = vmatprep.subr.mxu0 0.0
    %151 = vmatpush1.msra.mxu0 0.0
    %152 = vmatprep.subr.mxu0 0.0
    %153 = vmatpush1.msra.mxu0 0.0
    %154 = vmatprep.subr.mxu0 0.0
    %155 = vmatpush1.msra.mxu0 0.0
    %156 = vmatprep.subr.mxu0 0.0
    %157 = vmatpush1.msra.mxu0 0.0
    %158 = vmatprep.subr.mxu0 0.0
    %159 = vmatpush1.msra.mxu0 0.0
    %160 = vmatprep.subr.mxu0 0.0
    %161 = vmatpush1.msra.mxu0 0.0
    %162 = vmatprep.subr.mxu0 0.0
    %163 = vmatpush1.msra.mxu0 0.0
    %164 = vmatprep.subr.mxu0 0.0
    %165 = vmatpush1.msra.mxu0 0.0
    %166 = vmatprep.subr.mxu0 0.0
    %167 = vmatpush1.msra.mxu0 0.0
    %168 = vmatprep.subr.mxu0 0.0
    %169 = vmatpush1.msra.mxu0 0.0
    %170 = vmatprep.subr.mxu0 0.0
    %171 = vmatpush1.msra.mxu0 0.0
    %172 = vmatprep.subr.mxu0 0.0
    %173 = vmatpush1.msra.mxu0 0.0
    %174 = vmatprep.subr.mxu0 0.0
    %175 = vmatpush1.msra.mxu0 %v128
    %176 = vmatprep.subr.mxu0 0.0
    %177 = vmatpush1.msra.mxu0 %v127
    %178 = vmatprep.subr.mxu0 0.0
    %179 = vmatpush2.msra.mxu0 0.0
    %180 = vmatprep.subr.mxu0 0.0
    %181 = vmatpush2.msra.mxu0 0.0
    %182 = vmatprep.subr.mxu0 0.0
    %183 = vmatpush2.msra.mxu0 0.0
    %184 = vmatprep.subr.mxu0 0.0
    %185 = vmatpush2.msra.mxu0 0.0
    %186 = vmatprep.subr.mxu0 0.0
    %187 = vmatpush2.msra.mxu0 0.0
    %188 = vmatprep.subr.mxu0 0.0
    %189 = vmatpush2.msra.mxu0 0.0
    %190 = vmatprep.subr.mxu0 0.0
    %191 = vmatpush2.msra.mxu0 0.0
    %192 = vmatprep.subr.mxu0 0.0
    %193 = vmatpush2.msra.mxu0 0.0
    %194 = vmatprep.subr.mxu0 0.0
    %195 = vmatpush2.msra.mxu0 0.0
    %196 = vmatprep.subr.mxu0 0.0
    %197 = vmatpush2.msra.mxu0 0.0
    %198 = vmatprep.subr.mxu0 0.0
    %199 = vmatpush2.msra.mxu0 0.0
    %200 = vmatprep.subr.mxu0 0.0
    %201 = vmatpush2.msra.mxu0 0.0
    %202 = vmatprep.subr.mxu0 0.0
    %203 = vmatpush2.msra.mxu0 0.0
    %204 = vmatprep.subr.mxu0 0.0
    %205 = vmatpush2.msra.mxu0 0.0
    %206 = vmatprep.subr.mxu0 0.0
    %207 = vmatpush2.msra.mxu0 0.0
    %208 = vmatprep.subr.mxu0 0.0
    %209 = vmatpush2.msra.mxu0 0.0
    %210 = vmatprep.mubr.f32.mxu0 0.0
    %211 = vmatmul.mubr.f32.gmra.mxu0 %v135
    %v212 = vpop.f32.mrf.mxu0
    %v213 = vadd.f32 %v132, %v212
    %v214 = vpop.f32.mrf.mxu0
    %215 = vmatprep.mubr.f32.mxu0 0.0
    %216 = vmatmul.mubr.f32.gmra.mxu0 %v138
    %v217 = vpop.f32.mrf.mxu0
    %v218 = vadd.f32 %v132, %v217
    %v219 = vpop.f32.mrf.mxu0
    %220 = vmatprep.mubr.f32.mxu0 0.0
    %221 = vmatmul.mubr.f32.gmra.mxu0 %v141
    %v222 = vpop.f32.mrf.mxu0
    %v223 = vadd.f32 %v132, %v222
    %v224 = vpop.f32.mrf.mxu0
    %225 = vmatprep.mubr.f32.mxu0 0.0
    %226 = vmatmul.mubr.f32.gmra.mxu0 %v144
    %v227 = vpop.f32.mrf.mxu0
    %v228 = vadd.f32 %v132, %v227
    %v229 = vpop.f32.mrf.mxu0
    %230 = vdwg.mxu0
    %v231 = vld [vmem:[%s3] sm:$0xff]
    %v232 = vld [vmem:[%s3 + $0x8] sm:$0xff]
    %v233 = vld [vmem:[%s3 + $0x10] sm:$0xff]
    %v234 = vld [vmem:[%s3 + $0x18] sm:$0xff]
    %v235 = vlaneseq
    %v236 = vshrl.u32 %v235, 7
    %v237 = vsub.s32 0, %v236
    %v238 = vrot.slane %v118, %v237
    %vm239 = vcmask 261120
    %v241 = vsel %vm239, %v213, 0
    %v244 = vsel %vm239, %v218, 0
    %v247 = vsel %vm239, %v223, 0
    %v250 = vsel %vm239, %v228, 0
    %252 = vmatprep.subr.mxu0 0.0
    %253 = vmatpush1.msra.mxu0 0.0
    %254 = vmatprep.subr.mxu0 0.0
    %255 = vmatpush1.msra.mxu0 0.0
    %256 = vmatprep.subr.mxu0 0.0
    %257 = vmatpush1.msra.mxu0 0.0
    %258 = vmatprep.subr.mxu0 0.0
    %259 = vmatpush1.msra.mxu0 0.0
    %260 = vmatprep.subr.mxu0 0.0
    %261 = vmatpush1.msra.mxu0 0.0
    %262 = vmatprep.subr.mxu0 0.0
    %263 = vmatpush1.msra.mxu0 0.0
    %264 = vmatprep.subr.mxu0 0.0
    %265 = vmatpush1.msra.mxu0 0.0
    %266 = vmatprep.subr.mxu0 0.0
    %267 = vmatpush1.msra.mxu0 0.0
    %268 = vmatprep.subr.mxu0 0.0
    %269 = vmatpush1.msra.mxu0 0.0
    %270 = vmatprep.subr.mxu0 0.0
    %271 = vmatpush1.msra.mxu0 0.0
    %272 = vmatprep.subr.mxu0 0.0
    %273 = vmatpush1.msra.mxu0 0.0
    %274 = vmatprep.subr.mxu0 0.0
    %275 = vmatpush1.msra.mxu0 0.0
    %276 = vmatprep.subr.mxu0 0.0
    %277 = vmatpush1.msra.mxu0 %v234
    %278 = vmatprep.subr.mxu0 0.0
    %279 = vmatpush1.msra.mxu0 %v233
    %280 = vmatprep.subr.mxu0 0.0
    %281 = vmatpush1.msra.mxu0 %v232
    %282 = vmatprep.subr.mxu0 0.0
    %283 = vmatpush1.msra.mxu0 %v231
    %284 = vmatprep.subr.mxu0 0.0
    %285 = vmatpush2.msra.mxu0 0.0
    %286 = vmatprep.subr.mxu0 0.0
    %287 = vmatpush2.msra.mxu0 0.0
    %288 = vmatprep.subr.mxu0 0.0
    %289 = vmatpush2.msra.mxu0 0.0
    %290 = vmatprep.subr.mxu0 0.0
    %291 = vmatpush2.msra.mxu0 0.0
    %292 = vmatprep.subr.mxu0 0.0
    %293 = vmatpush2.msra.mxu0 0.0
    %294 = vmatprep.subr.mxu0 0.0
    %295 = vmatpush2.msra.mxu0 0.0
    %296 = vmatprep.subr.mxu0 0.0
    %297 = vmatpush2.msra.mxu0 0.0
    %298 = vmatprep.subr.mxu0 0.0
    %299 = vmatpush2.msra.mxu0 0.0
    %300 = vmatprep.subr.mxu0 0.0
    %301 = vmatpush2.msra.mxu0 0.0
    %302 = vmatprep.subr.mxu0 0.0
    %303 = vmatpush2.msra.mxu0 0.0
    %304 = vmatprep.subr.mxu0 0.0
    %305 = vmatpush2.msra.mxu0 0.0
    %306 = vmatprep.subr.mxu0 0.0
    %307 = vmatpush2.msra.mxu0 0.0
    %308 = vmatprep.subr.mxu0 0.0
    %309 = vmatpush2.msra.mxu0 0.0
    %310 = vmatprep.subr.mxu0 0.0
    %311 = vmatpush2.msra.mxu0 0.0
    %312 = vmatprep.subr.mxu0 0.0
    %313 = vmatpush2.msra.mxu0 0.0
    %314 = vmatprep.subr.mxu0 0.0
    %315 = vmatpush2.msra.mxu0 0.0
    %316 = vmatprep.mubr.f32.mxu0 0.0
    %317 = vmatmul.mubr.f32.gmra.mxu0 %v241
    %v318 = vpop.f32.mrf.mxu0
    %v319 = vadd.f32 %v238, %v318
    %v320 = vpop.f32.mrf.mxu0
    %321 = vmatprep.mubr.f32.mxu0 0.0
    %322 = vmatmul.mubr.f32.gmra.mxu0 %v244
    %v323 = vpop.f32.mrf.mxu0
    %v324 = vadd.f32 %v238, %v323
    %v325 = vpop.f32.mrf.mxu0
    %326 = vmatprep.mubr.f32.mxu0 0.0
    %327 = vmatmul.mubr.f32.gmra.mxu0 %v247
    %v328 = vpop.f32.mrf.mxu0
    %v329 = vadd.f32 %v238, %v328
    %v330 = vpop.f32.mrf.mxu0
    %331 = vmatprep.mubr.f32.mxu0 0.0
    %332 = vmatmul.mubr.f32.gmra.mxu0 %v250
    %v333 = vpop.f32.mrf.mxu0
    %v334 = vadd.f32 %v238, %v333
    %v335 = vpop.f32.mrf.mxu0
    %336 = vdwg.mxu0
    %v337 = vld [vmem:[%s4] sm:$0xff]
    %v338 = vld [vmem:[%s4 + $0x8] sm:$0xff]
    %v339 = vld [vmem:[%s4 + $0x10] sm:$0xff]
    %v340 = vld [vmem:[%s4 + $0x18] sm:$0xff]
    %v341 = vld [vmem:[#allocation7] sm:$0xff]
    %v342 = vld [vmem:[#allocation7 + $0x8] sm:$0xff]
    %v343 = vld [vmem:[#allocation7 + $0x10] sm:$0xff]
    %v344 = vld [vmem:[#allocation7 + $0x18] sm:$0xff]
    %v346 = vsel %vm239, %v329, 0
    %v349 = vsel %vm239, %v334, 0
    %351 = vmatprep.subr.mxu0 0.0
    %352 = vmatpush1.msra.mxu0 0.0
    %353 = vmatprep.subr.mxu0 0.0
    %354 = vmatpush1.msra.mxu0 0.0
    %355 = vmatprep.subr.mxu0 0.0
    %356 = vmatpush1.msra.mxu0 0.0
    %357 = vmatprep.subr.mxu0 0.0
    %358 = vmatpush1.msra.mxu0 0.0
    %359 = vmatprep.subr.mxu0 0.0
    %360 = vmatpush1.msra.mxu0 0.0
    %361 = vmatprep.subr.mxu0 0.0
    %362 = vmatpush1.msra.mxu0 0.0
    %363 = vmatprep.subr.mxu0 0.0
    %364 = vmatpush1.msra.mxu0 0.0
    %365 = vmatprep.subr.mxu0 0.0
    %366 = vmatpush1.msra.mxu0 0.0
    %367 = vmatprep.subr.mxu0 0.0
    %368 = vmatpush1.msra.mxu0 0.0
    %369 = vmatprep.subr.mxu0 0.0
    %370 = vmatpush1.msra.mxu0 0.0
    %371 = vmatprep.subr.mxu0 0.0
    %372 = vmatpush1.msra.mxu0 0.0
    %373 = vmatprep.subr.mxu0 0.0
    %374 = vmatpush1.msra.mxu0 0.0
    %375 = vmatprep.subr.mxu0 0.0
    %376 = vmatpush1.msra.mxu0 %v344
    %377 = vmatprep.subr.mxu0 0.0
    %378 = vmatpush1.msra.mxu0 %v343
    %379 = vmatprep.subr.mxu0 0.0
    %380 = vmatpush1.msra.mxu0 %v342
    %381 = vmatprep.subr.mxu0 0.0
    %382 = vmatpush1.msra.mxu0 %v341
    %383 = vmatprep.subr.mxu0 0.0
    %384 = vmatpush2.msra.mxu0 0.0
    %385 = vmatprep.subr.mxu0 0.0
    %386 = vmatpush2.msra.mxu0 0.0
    %387 = vmatprep.subr.mxu0 0.0
    %388 = vmatpush2.msra.mxu0 0.0
    %389 = vmatprep.subr.mxu0 0.0
    %390 = vmatpush2.msra.mxu0 0.0
    %391 = vmatprep.subr.mxu0 0.0
    %392 = vmatpush2.msra.mxu0 0.0
    %393 = vmatprep.subr.mxu0 0.0
    %394 = vmatpush2.msra.mxu0 0.0
    %395 = vmatprep.subr.mxu0 0.0
    %396 = vmatpush2.msra.mxu0 0.0
    %397 = vmatprep.subr.mxu0 0.0
    %398 = vmatpush2.msra.mxu0 0.0
    %399 = vmatprep.subr.mxu0 0.0
    %400 = vmatpush2.msra.mxu0 0.0
    %401 = vmatprep.subr.mxu0 0.0
    %402 = vmatpush2.msra.mxu0 0.0
    %403 = vmatprep.subr.mxu0 0.0
    %404 = vmatpush2.msra.mxu0 0.0
    %405 = vmatprep.subr.mxu0 0.0
    %406 = vmatpush2.msra.mxu0 0.0
    %407 = vmatprep.subr.mxu0 0.0
    %408 = vmatpush2.msra.mxu0 0.0
    %409 = vmatprep.subr.mxu0 0.0
    %410 = vmatpush2.msra.mxu0 0.0
    %411 = vmatprep.subr.mxu0 0.0
    %412 = vmatpush2.msra.mxu0 0.0
    %413 = vmatprep.subr.mxu0 0.0
    %414 = vmatpush2.msra.mxu0 0.0
    %415 = vmatprep.mubr.f32.mxu0 0.0
    %416 = vmatmul.mubr.f32.gmra.mxu0 %v346
    %v417 = vpop.f32.mrf.mxu0
    %v418 = vadd.f32 0.0, %v417
    %v419 = vpop.f32.mrf.mxu0
    %420 = vmatprep.mubr.f32.mxu0 0.0
    %421 = vmatmul.mubr.f32.gmra.mxu0 %v349
    %v422 = vpop.f32.mrf.mxu0
    %v423 = vadd.f32 0.0, %v422
    %v424 = vpop.f32.mrf.mxu0
    %425 = vdwg.mxu0
    %v427 = vsel %vm239, %v319, 0
    %v430 = vsel %vm239, %v324, 0
    %432 = vmatprep.subr.mxu0 0.0
    %433 = vmatpush1.msra.mxu0 0.0
    %434 = vmatprep.subr.mxu0 0.0
    %435 = vmatpush1.msra.mxu0 0.0
    %436 = vmatprep.subr.mxu0 0.0
    %437 = vmatpush1.msra.mxu0 0.0
    %438 = vmatprep.subr.mxu0 0.0
    %439 = vmatpush1.msra.mxu0 0.0
    %440 = vmatprep.subr.mxu0 0.0
    %441 = vmatpush1.msra.mxu0 0.0
    %442 = vmatprep.subr.mxu0 0.0
    %443 = vmatpush1.msra.mxu0 0.0
    %444 = vmatprep.subr.mxu0 0.0
    %445 = vmatpush1.msra.mxu0 0.0
    %446 = vmatprep.subr.mxu0 0.0
    %447 = vmatpush1.msra.mxu0 0.0
    %448 = vmatprep.subr.mxu0 0.0
    %449 = vmatpush1.msra.mxu0 0.0
    %450 = vmatprep.subr.mxu0 0.0
    %451 = vmatpush1.msra.mxu0 0.0
    %452 = vmatprep.subr.mxu0 0.0
    %453 = vmatpush1.msra.mxu0 0.0
    %454 = vmatprep.subr.mxu0 0.0
    %455 = vmatpush1.msra.mxu0 0.0
    %456 = vmatprep.subr.mxu0 0.0
    %457 = vmatpush1.msra.mxu0 %v340
    %458 = vmatprep.subr.mxu0 0.0
    %459 = vmatpush1.msra.mxu0 %v339
    %460 = vmatprep.subr.mxu0 0.0
    %461 = vmatpush1.msra.mxu0 %v338
    %462 = vmatprep.subr.mxu0 0.0
    %463 = vmatpush1.msra.mxu0 %v337
    %464 = vmatprep.subr.mxu0 0.0
    %465 = vmatpush2.msra.mxu0 0.0
    %466 = vmatprep.subr.mxu0 0.0
    %467 = vmatpush2.msra.mxu0 0.0
    %468 = vmatprep.subr.mxu0 0.0
    %469 = vmatpush2.msra.mxu0 0.0
    %470 = vmatprep.subr.mxu0 0.0
    %471 = vmatpush2.msra.mxu0 0.0
    %472 = vmatprep.subr.mxu0 0.0
    %473 = vmatpush2.msra.mxu0 0.0
    %474 = vmatprep.subr.mxu0 0.0
    %475 = vmatpush2.msra.mxu0 0.0
    %476 = vmatprep.subr.mxu0 0.0
    %477 = vmatpush2.msra.mxu0 0.0
    %478 = vmatprep.subr.mxu0 0.0
    %479 = vmatpush2.msra.mxu0 0.0
    %480 = vmatprep.subr.mxu0 0.0
    %481 = vmatpush2.msra.mxu0 0.0
    %482 = vmatprep.subr.mxu0 0.0
    %483 = vmatpush2.msra.mxu0 0.0
    %484 = vmatprep.subr.mxu0 0.0
    %485 = vmatpush2.msra.mxu0 0.0
    %486 = vmatprep.subr.mxu0 0.0
    %487 = vmatpush2.msra.mxu0 0.0
    %488 = vmatprep.subr.mxu0 0.0
    %489 = vmatpush2.msra.mxu0 0.0
    %490 = vmatprep.subr.mxu0 0.0
    %491 = vmatpush2.msra.mxu0 0.0
    %492 = vmatprep.subr.mxu0 0.0
    %493 = vmatpush2.msra.mxu0 0.0
    %494 = vmatprep.subr.mxu0 0.0
    %495 = vmatpush2.msra.mxu0 0.0
    %496 = vmatprep.mubr.f32.mxu0 0.0
    %497 = vmatmul.mubr.f32.gmra.mxu0 %v427
    %v498 = vpop.f32.mrf.mxu0
    %v499 = vadd.f32 %v418, %v498
    %v500 = vpop.f32.mrf.mxu0
    %501 = vmatprep.mubr.f32.mxu0 0.0
    %502 = vmatmul.mubr.f32.gmra.mxu0 %v430
    %v503 = vpop.f32.mrf.mxu0
    %v504 = vadd.f32 %v423, %v503
    %v505 = vpop.f32.mrf.mxu0
    %506 = vdwg.mxu0
    %v507 = vlaneseq
    %v508 = vshrl.u32 %v507, 7
    %v509 = vsub.s32 0, %v508
    %v510 = vrot.slane %v119, %v509
    %v511 = vadd.f32 %v499, %v510
    %v512 = vadd.f32 %v504, %v510
    %v513 = vld [vmem:[#allocation9] sm:$0xff]
    %v514 = vld [vmem:[#allocation9 + $0x8] sm:$0xff]
    %v515 = vld [vmem:[#allocation9 + $0x10] sm:$0xff]
    %v516 = vld [vmem:[#allocation9 + $0x18] sm:$0xff]
    %v517 = vlaneseq
    %v518 = vshrl.u32 %v517, 7
    %v519 = vsub.s32 0, %v518
    %v520 = vrot.slane %v120, %v519
    %v522 = vsel %vm239, %v511, 0
    %v525 = vsel %vm239, %v512, 0
    %527 = vmatprep.subr.mxu0 0.0
    %528 = vmatpush1.msra.mxu0 0.0
    %529 = vmatprep.subr.mxu0 0.0
    %530 = vmatpush1.msra.mxu0 0.0
    %531 = vmatprep.subr.mxu0 0.0
    %532 = vmatpush1.msra.mxu0 0.0
    %533 = vmatprep.subr.mxu0 0.0
    %534 = vmatpush1.msra.mxu0 0.0
    %535 = vmatprep.subr.mxu0 0.0
    %536 = vmatpush1.msra.mxu0 0.0
    %537 = vmatprep.subr.mxu0 0.0
    %538 = vmatpush1.msra.mxu0 0.0
    %539 = vmatprep.subr.mxu0 0.0
    %540 = vmatpush1.msra.mxu0 0.0
    %541 = vmatprep.subr.mxu0 0.0
    %542 = vmatpush1.msra.mxu0 0.0
    %543 = vmatprep.subr.mxu0 0.0
    %544 = vmatpush1.msra.mxu0 0.0
    %545 = vmatprep.subr.mxu0 0.0
    %546 = vmatpush1.msra.mxu0 0.0
    %547 = vmatprep.subr.mxu0 0.0
    %548 = vmatpush1.msra.mxu0 0.0
    %549 = vmatprep.subr.mxu0 0.0
    %550 = vmatpush1.msra.mxu0 0.0
    %551 = vmatprep.subr.mxu0 0.0
    %552 = vmatpush1.msra.mxu0 %v516
    %553 = vmatprep.subr.mxu0 0.0
    %554 = vmatpush1.msra.mxu0 %v515
    %555 = vmatprep.subr.mxu0 0.0
    %556 = vmatpush1.msra.mxu0 %v514
    %557 = vmatprep.subr.mxu0 0.0
    %558 = vmatpush1.msra.mxu0 %v513
    %559 = vmatprep.subr.mxu0 0.0
    %560 = vmatpush2.msra.mxu0 0.0
    %561 = vmatprep.subr.mxu0 0.0
    %562 = vmatpush2.msra.mxu0 0.0
    %563 = vmatprep.subr.mxu0 0.0
    %564 = vmatpush2.msra.mxu0 0.0
    %565 = vmatprep.subr.mxu0 0.0
    %566 = vmatpush2.msra.mxu0 0.0
    %567 = vmatprep.subr.mxu0 0.0
    %568 = vmatpush2.msra.mxu0 0.0
    %569 = vmatprep.subr.mxu0 0.0
    %570 = vmatpush2.msra.mxu0 0.0
    %571 = vmatprep.subr.mxu0 0.0
    %572 = vmatpush2.msra.mxu0 0.0
    %573 = vmatprep.subr.mxu0 0.0
    %574 = vmatpush2.msra.mxu0 0.0
    %575 = vmatprep.subr.mxu0 0.0
    %576 = vmatpush2.msra.mxu0 0.0
    %577 = vmatprep.subr.mxu0 0.0
    %578 = vmatpush2.msra.mxu0 0.0
    %579 = vmatprep.subr.mxu0 0.0
    %580 = vmatpush2.msra.mxu0 0.0
    %581 = vmatprep.subr.mxu0 0.0
    %582 = vmatpush2.msra.mxu0 0.0
    %583 = vmatprep.subr.mxu0 0.0
    %584 = vmatpush2.msra.mxu0 0.0
    %585 = vmatprep.subr.mxu0 0.0
    %586 = vmatpush2.msra.mxu0 0.0
    %587 = vmatprep.subr.mxu0 0.0
    %588 = vmatpush2.msra.mxu0 0.0
    %589 = vmatprep.subr.mxu0 0.0
    %590 = vmatpush2.msra.mxu0 0.0
    %591 = vmatprep.mubr.f32.mxu0 0.0
    %592 = vmatmul.mubr.f32.gmra.mxu0 %v522
    %v593 = vpop.f32.mrf.mxu0
    %v594 = vadd.f32 %v520, %v593
    %v595 = vpop.f32.mrf.mxu0
    %596 = vmatprep.mubr.f32.mxu0 0.0
    %597 = vmatmul.mubr.f32.gmra.mxu0 %v525
    %v598 = vpop.f32.mrf.mxu0
    %v599 = vadd.f32 %v520, %v598
    %v600 = vpop.f32.mrf.mxu0
    %601 = vdwg.mxu0
    %v602 = vld [vmem:[#allocation10] sm:$0xff]
    %v603 = vld [vmem:[#allocation10 + $0x8] sm:$0xff]
    %v604 = vld [vmem:[#allocation10 + $0x10] sm:$0xff]
    %v605 = vld [vmem:[#allocation10 + $0x18] sm:$0xff]
    %v606 = vlaneseq
    %v607 = vshrl.u32 %v606, 7
    %v608 = vsub.s32 0, %v607
    %v609 = vrot.slane %v121, %v608
    %v611 = vsel %vm239, %v594, 0
    %v614 = vsel %vm239, %v599, 0
    %616 = vmatprep.subr.mxu0 0.0
    %617 = vmatpush1.msra.mxu0 0.0
    %618 = vmatprep.subr.mxu0 0.0
    %619 = vmatpush1.msra.mxu0 0.0
    %620 = vmatprep.subr.mxu0 0.0
    %621 = vmatpush1.msra.mxu0 0.0
    %622 = vmatprep.subr.mxu0 0.0
    %623 = vmatpush1.msra.mxu0 0.0
    %624 = vmatprep.subr.mxu0 0.0
    %625 = vmatpush1.msra.mxu0 0.0
    %626 = vmatprep.subr.mxu0 0.0
    %627 = vmatpush1.msra.mxu0 0.0
    %628 = vmatprep.subr.mxu0 0.0
    %629 = vmatpush1.msra.mxu0 0.0
    %630 = vmatprep.subr.mxu0 0.0
    %631 = vmatpush1.msra.mxu0 0.0
    %632 = vmatprep.subr.mxu0 0.0
    %633 = vmatpush1.msra.mxu0 0.0
    %634 = vmatprep.subr.mxu0 0.0
    %635 = vmatpush1.msra.mxu0 0.0
    %636 = vmatprep.subr.mxu0 0.0
    %637 = vmatpush1.msra.mxu0 0.0
    %638 = vmatprep.subr.mxu0 0.0
    %639 = vmatpush1.msra.mxu0 0.0
    %640 = vmatprep.subr.mxu0 0.0
    %641 = vmatpush1.msra.mxu0 %v605
    %642 = vmatprep.subr.mxu0 0.0
    %643 = vmatpush1.msra.mxu0 %v604
    %644 = vmatprep.subr.mxu0 0.0
    %645 = vmatpush1.msra.mxu0 %v603
    %646 = vmatprep.subr.mxu0 0.0
    %647 = vmatpush1.msra.mxu0 %v602
    %648 = vmatprep.subr.mxu0 0.0
    %649 = vmatpush2.msra.mxu0 0.0
    %650 = vmatprep.subr.mxu0 0.0
    %651 = vmatpush2.msra.mxu0 0.0
    %652 = vmatprep.subr.mxu0 0.0
    %653 = vmatpush2.msra.mxu0 0.0
    %654 = vmatprep.subr.mxu0 0.0
    %655 = vmatpush2.msra.mxu0 0.0
    %656 = vmatprep.subr.mxu0 0.0
    %657 = vmatpush2.msra.mxu0 0.0
    %658 = vmatprep.subr.mxu0 0.0
    %659 = vmatpush2.msra.mxu0 0.0
    %660 = vmatprep.subr.mxu0 0.0
    %661 = vmatpush2.msra.mxu0 0.0
    %662 = vmatprep.subr.mxu0 0.0
    %663 = vmatpush2.msra.mxu0 0.0
    %664 = vmatprep.subr.mxu0 0.0
    %665 = vmatpush2.msra.mxu0 0.0
    %666 = vmatprep.subr.mxu0 0.0
    %667 = vmatpush2.msra.mxu0 0.0
    %668 = vmatprep.subr.mxu0 0.0
    %669 = vmatpush2.msra.mxu0 0.0
    %670 = vmatprep.subr.mxu0 0.0
    %671 = vmatpush2.msra.mxu0 0.0
    %672 = vmatprep.subr.mxu0 0.0
    %673 = vmatpush2.msra.mxu0 0.0
    %674 = vmatprep.subr.mxu0 0.0
    %675 = vmatpush2.msra.mxu0 0.0
    %676 = vmatprep.subr.mxu0 0.0
    %677 = vmatpush2.msra.mxu0 0.0
    %678 = vmatprep.subr.mxu0 0.0
    %679 = vmatpush2.msra.mxu0 0.0
    %680 = vmatprep.mubr.f32.mxu0 0.0
    %681 = vmatmul.mubr.f32.gmra.mxu0 %v611
    %v682 = vpop.f32.mrf.mxu0
    %v683 = vadd.f32 %v609, %v682
    %v684 = vpop.f32.mrf.mxu0
    %685 = vmatprep.mubr.f32.mxu0 0.0
    %686 = vmatmul.mubr.f32.gmra.mxu0 %v614
    %v687 = vpop.f32.mrf.mxu0
    %v688 = vadd.f32 %v609, %v687
    %v689 = vpop.f32.mrf.mxu0
    %690 = vdwg.mxu0
    %v691 = vld [vmem:[%s8] sm:$0xff]
    %v692 = vld [vmem:[%s8 + $0x8] sm:$0xff]
    %v693 = vld [vmem:[%s8 + $0x10] sm:$0xff]
    %v694 = vld [vmem:[%s8 + $0x18] sm:$0xff]
    %v695 = vld [vmem:[%s8 + $0x20] sm:$0xff]
    %v696 = vld [vmem:[%s8 + $0x28] sm:$0xff]
    %v697 = vld [vmem:[%s8 + $0x30] sm:$0xff]
    %v698 = vld [vmem:[%s8 + $0x38] sm:$0xff]
    %v699 = vlaneseq
    %v700 = vshrl.u32 %v699, 7
    %v701 = vsub.s32 0, %v700
    %v702 = vrot.slane %v122, %v701
    %vm703 = vcmask 523264
    %v705 = vsel %vm703, %v683, 0
    %v708 = vsel %vm703, %v688, 0
    %710 = vmatprep.subr.mxu0 0.0
    %711 = vmatpush1.msra.mxu0 0.0
    %712 = vmatprep.subr.mxu0 0.0
    %713 = vmatpush1.msra.mxu0 0.0
    %714 = vmatprep.subr.mxu0 0.0
    %715 = vmatpush1.msra.mxu0 0.0
    %716 = vmatprep.subr.mxu0 0.0
    %717 = vmatpush1.msra.mxu0 0.0
    %718 = vmatprep.subr.mxu0 0.0
    %719 = vmatpush1.msra.mxu0 0.0
    %720 = vmatprep.subr.mxu0 0.0
    %721 = vmatpush1.msra.mxu0 0.0
    %722 = vmatprep.subr.mxu0 0.0
    %723 = vmatpush1.msra.mxu0 0.0
    %724 = vmatprep.subr.mxu0 0.0
    %725 = vmatpush1.msra.mxu0 0.0
    %726 = vmatprep.subr.mxu0 0.0
    %727 = vmatpush1.msra.mxu0 %v698
    %728 = vmatprep.subr.mxu0 0.0
    %729 = vmatpush1.msra.mxu0 %v697
    %730 = vmatprep.subr.mxu0 0.0
    %731 = vmatpush1.msra.mxu0 %v696
    %732 = vmatprep.subr.mxu0 0.0
    %733 = vmatpush1.msra.mxu0 %v695
    %734 = vmatprep.subr.mxu0 0.0
    %735 = vmatpush1.msra.mxu0 %v694
    %736 = vmatprep.subr.mxu0 0.0
    %737 = vmatpush1.msra.mxu0 %v693
    %738 = vmatprep.subr.mxu0 0.0
    %739 = vmatpush1.msra.mxu0 %v692
    %740 = vmatprep.subr.mxu0 0.0
    %741 = vmatpush1.msra.mxu0 %v691
    %742 = vmatprep.subr.mxu0 0.0
    %743 = vmatpush2.msra.mxu0 0.0
    %744 = vmatprep.subr.mxu0 0.0
    %745 = vmatpush2.msra.mxu0 0.0
    %746 = vmatprep.subr.mxu0 0.0
    %747 = vmatpush2.msra.mxu0 0.0
    %748 = vmatprep.subr.mxu0 0.0
    %749 = vmatpush2.msra.mxu0 0.0
    %750 = vmatprep.subr.mxu0 0.0
    %751 = vmatpush2.msra.mxu0 0.0
    %752 = vmatprep.subr.mxu0 0.0
    %753 = vmatpush2.msra.mxu0 0.0
    %754 = vmatprep.subr.mxu0 0.0
    %755 = vmatpush2.msra.mxu0 0.0
    %756 = vmatprep.subr.mxu0 0.0
    %757 = vmatpush2.msra.mxu0 0.0
    %758 = vmatprep.subr.mxu0 0.0
    %759 = vmatpush2.msra.mxu0 0.0
    %760 = vmatprep.subr.mxu0 0.0
    %761 = vmatpush2.msra.mxu0 0.0
    %762 = vmatprep.subr.mxu0 0.0
    %763 = vmatpush2.msra.mxu0 0.0
    %764 = vmatprep.subr.mxu0 0.0
    %765 = vmatpush2.msra.mxu0 0.0
    %766 = vmatprep.subr.mxu0 0.0
    %767 = vmatpush2.msra.mxu0 0.0
    %768 = vmatprep.subr.mxu0 0.0
    %769 = vmatpush2.msra.mxu0 0.0
    %770 = vmatprep.subr.mxu0 0.0
    %771 = vmatpush2.msra.mxu0 0.0
    %772 = vmatprep.subr.mxu0 0.0
    %773 = vmatpush2.msra.mxu0 0.0
    %774 = vmatprep.mubr.f32.mxu0 0.0
    %775 = vmatmul.mubr.f32.gmra.mxu0 %v705
    %v776 = vpop.f32.mrf.mxu0
    %v777 = vadd.f32 %v702, %v776
    %v778 = vpop.f32.mrf.mxu0
    %779 = vmatprep.mubr.f32.mxu0 0.0
    %780 = vmatmul.mubr.f32.gmra.mxu0 %v708
    %v781 = vpop.f32.mrf.mxu0
    %v782 = vadd.f32 %v702, %v781
    %v783 = vpop.f32.mrf.mxu0
    %784 = vdwg.mxu0
    %vm785 = vcmask 15360
    %786 = vst.msk [vmem:[%s10] sm:$0xff] %vm785, %v777
    %787 = vst.msk [vmem:[%s10 + $0x8] sm:$0xff] %vm785, %v782
    // Predicated region
    $region66: #{tpu_custom_call.1} parent=1 // pred_check
      _
    $region67: #{tpu_custom_call.1} parent=1 // pred_check_branch
      %789 = sbr.rel (0) target = $region69
    $region68: #{tpu_custom_call.1} parent=1 // pred_region
      _
    $region69: #{tpu_custom_call.1} parent=1 // pred_fallthru
      _
    // Predicated region
    $region70: #{tpu_custom_call.1} parent=1 // pred_check
      _
    $region71: #{tpu_custom_call.1} parent=1 // pred_check_branch
      %791 = sbr.rel (0) target = $region73
    $region72: #{tpu_custom_call.1} parent=1 // pred_region
      _
    $region73: #{tpu_custom_call.1} parent=1 // pred_fallthru
      _
    %792 = vsyncpa [#allocation3], 1
    %793 = vsyncpa [#allocation5], 1
    %794 = vsyncpa [#allocation8], 1
    %795 = vsyncpa [#allocation11], 1

</llo_original>
